<compile_context>
chip_gen: v5e
topology: v5e:2x2
jax: 0.10.0
libtpu: 0.0.40
codegen_flags: <defaults>
</compile_context>

<pallas_src>
import math
from functools import partial

import jax
import jax.numpy as jnp
from jax.experimental import pallas as pl
from jax.experimental.pallas import tpu as pltpu


# ----------------------------- in-kernel helpers -----------------------------

def _gelu_tanh(x):
    # TODO(synk): tanh-approx GELU (EUP tanh) vs torch.nn.GELU()'s exact erf;
    # max abs deviation ~1e-3, on par with the bf16-matmul noise we accept.
    c = math.sqrt(2.0 / math.pi)
    return 0.5 * x * (1.0 + jnp.tanh(c * (x + 0.044715 * x * x * x)))


def _layer_norm(z, g, b, eps=1e-5):
    mu = jnp.mean(z, axis=-1, keepdims=True)
    var = jnp.mean((z - mu) ** 2, axis=-1, keepdims=True)
    return (z - mu) * jax.lax.rsqrt(var + eps) * g + b


# --------------------------------- kernels ------------------------------------

_LAYER_KEYS = ("wq", "bq", "wak", "bak", "wbk", "bbk", "wav", "bav",
               "wbv", "bbv", "wo", "bo", "f1w", "f1b", "f2w", "f2b",
               "n1g", "n1b", "n2g", "n2b")


def _vit_mla_kernel(x_ref, pos_ref, bias_ref, pw_ref, pb_ref, *rest, num_heads):
    (wq, bq, wak, bak, wbk, bbk, wav, bav, wbv, bbv,
     wo, bo, f1w, f1b, f2w, f2b, n1g, n1b, n2g, n2b,
     hout_ref, carry_ref) = rest

    l = pl.program_id(1)
    bt, N, E = carry_ref.shape          # (batch tile, patches, emb_dim)
    M = bt * N                          # flattened row dim for all GEMMs
    H = num_heads
    d = E // H
    bf16 = jnp.bfloat16

    def mm(a_bf16, w_ref):
        # bf16 MXU operands, f32 accumulation.
        return jnp.dot(a_bf16, w_ref[...], preferred_element_type=jnp.float32)

    # ---- l == 0: patch_proj(x) + pos_emb seeds the VMEM-resident activation ----
    @pl.when(l == 0)
    def _():
        xp = x_ref[...].reshape(M, x_ref.shape[-1]).astype(bf16)   # (M, patch_dim)
        h0 = mm(xp, pw_ref) + pb_ref[...]                          # (M, E) f32
        carry_ref[...] = h0.reshape(bt, N, E) + pos_ref[...][None]

    xf = carry_ref[...].reshape(M, E)                              # f32 residual stream
    x_bf = xf.astype(bf16)                                         # hoisted cast
    bias = bias_ref[...]                                           # (N, N) f32

    # ---- Ropeless MLA attention: full E-wide projection GEMMs ----
    q = mm(x_bf, wq) + bq[...]                                     # (M, E), scale pre-folded
    kc = mm(x_bf, wak) + bak[...]                                  # (M, latent)
    vc = mm(x_bf, wav) + bav[...]                                  # (M, latent)
    kc_bf = kc.astype(bf16)
    vc_bf = vc.astype(bf16)
    k = mm(kc_bf, wbk) + bbk[...]                                  # (M, E)
    v = mm(vc_bf, wbv) + bbv[...]                                  # (M, E)

    q_bf = q.astype(bf16)
    k_bf = k.astype(bf16)
    v_bf = v.astype(bf16)

    # Per-head score/AV (inherently head-batched); static lane slices only.
    o_heads = []
    for h in range(H):                                             # static, unrolled
        lo, hi = h * d, (h + 1) * d
        qh = q_bf[:, lo:hi].reshape(bt, N, d)
        kh = k_bf[:, lo:hi].reshape(bt, N, d)
        vh = v_bf[:, lo:hi].reshape(bt, N, d)
        s = jnp.einsum("bnd,bmd->bnm", qh, kh,
                       preferred_element_type=jnp.float32)         # (bt, N, N) f32
        s = s + bias[None]
        s = s - jnp.max(s, axis=-1, keepdims=True)
        e = jnp.exp(s)
        p = e * pl.reciprocal(jnp.sum(e, axis=-1, keepdims=True), approx=True)
        oh = jnp.einsum("bnm,bmd->bnd", p.astype(bf16), vh,
                        preferred_element_type=jnp.float32)        # (bt, N, d)
        o_heads.append(oh.reshape(M, d))
    o_cat = jnp.concatenate(o_heads, axis=-1)                      # (M, E) lane-dense
    o_proj = mm(o_cat.astype(bf16), wo) + bo[...]                  # ONE proj_o GEMM

    # ---- residual + LayerNorm + FFN ----
    x1 = _layer_norm(xf + o_proj, n1g[...], n1b[...])
    x1_bf = x1.astype(bf16)
    hmid = _gelu_tanh(mm(x1_bf, f1w) + f1b[...])
    ffn = mm(hmid.astype(bf16), f2w) + f2b[...]
    x2 = _layer_norm(x1 + ffn, n2g[...], n2b[...])
    carry_ref[...] = x2.reshape(bt, N, E)                          # stays in VMEM

    # ---- last layer: emit final hidden states (vocab proj is a separate call) ----
    @pl.when(l == pl.num_programs(1) - 1)
    def _():
        hout_ref[...] = x2.reshape(bt, N, E)


def _out_proj_kernel(h_ref, ow_ref, ob_ref, logits_ref):
    bt, N, E = h_ref.shape
    M = bt * N
    hb = h_ref[...].reshape(M, E).astype(jnp.bfloat16)
    lg = jnp.dot(hb, ow_ref[...], preferred_element_type=jnp.float32) + ob_ref[...]
    logits_ref[...] = lg.reshape(bt, N, logits_ref.shape[-1])


# ------------------------------ param packing --------------------------------

def pack_params(params, *, num_heads):
    """Cast torch-layout params into the kernel-ready layout (weights bf16)."""
    E = params["pos_emb"].shape[1]
    d = E // num_heads
    scale = 1.0 / math.sqrt(d)
    bf16 = jnp.bfloat16

    def per_layer(lp):
        wq_w, wq_b = lp["wq"]
        return dict(
            # fold the 1/sqrt(head_dim) attention scale into the Q projection
            wq=(wq_w * scale).astype(bf16), bq=wq_b * scale,
            wak=lp["wak"][0].astype(bf16), bak=lp["wak"][1],
            wbk=lp["wbk"][0].astype(bf16), bbk=lp["wbk"][1],
            wav=lp["wav"][0].astype(bf16), bav=lp["wav"][1],
            wbv=lp["wbv"][0].astype(bf16), bbv=lp["wbv"][1],
            wo=lp["proj_o"][0].astype(bf16), bo=lp["proj_o"][1],
            f1w=lp["ffn1"][0].astype(bf16), f1b=lp["ffn1"][1],
            f2w=lp["ffn2"][0].astype(bf16), f2b=lp["ffn2"][1],
            n1g=lp["norm1"][0], n1b=lp["norm1"][1],
            n2g=lp["norm2"][0], n2b=lp["norm2"][1],
        )

    per = [per_layer(lp) for lp in params["layers"]]
    packed = {k: jnp.stack([p[k] for p in per], axis=0) for k in _LAYER_KEYS}
    packed["pw"] = params["patch_proj"][0].astype(bf16)
    packed["pb"] = params["patch_proj"][1]
    packed["ow"] = params["out_proj"][0].astype(bf16)
    packed["ob"] = params["out_proj"][1]
    return packed


# ------------------------------- tiling helpers --------------------------------

def _tpu_vmem_capacity_bytes():
    cap = 64 * 1024 * 1024
    try:
        info = pltpu.get_tpu_info()
        cap = int(getattr(info, "vmem_capacity_bytes", cap) or cap)
    except Exception:
        pass
    return cap


def _pick_b_tile(B, N, *, target_rows, act_bytes_per_row, act_budget):
    """Largest divisor of B s.t. rows <= target, activations fit the VMEM
    budget, and >=2 batch tiles remain when B >= 2 (megacore on v7x)."""
    best = 1
    for c in range(1, B + 1):
        if B % c != 0:
            continue
        rows = c * N
        if rows > max(N, target_rows):
            continue
        if rows * act_bytes_per_row > act_budget:
            continue
        if B >= 2 and B // c < 2:
            continue
        best = c
    return best


def _pick_v_tile(V, cap=4096):
    """V itself if small; else the largest multiple-of-128 divisor <= cap."""
    if V <= cap:
        return V
    best = V
    for c in range(128, cap + 1, 128):
        if V % c == 0:
            best = c
    return best


# --------------------------------- wrappers ------------------------------------

def vit_mla_hidden(packed, x_in, pos, rel_bias, *, num_heads, b_tile, vmem_limit):
    """Fused patch-proj + all encoder blocks; returns final hidden states."""
    B, N, P = x_in.shape
    E = pos.shape[1]
    num_layers = packed["wq"].shape[0]
    grid = (B // b_tile, num_layers)         # layer axis innermost (carry in VMEM)

    def const_spec(shape):
        nd = len(shape)
        return pl.BlockSpec(tuple(shape), lambda bt, l, _n=nd: (0,) * _n)

    def layer_spec(shape):
        nd = len(shape)
        return pl.BlockSpec((None,) + tuple(shape[1:]),
                            lambda bt, l, _n=nd: (l,) + (0,) * (_n - 1))

    x_spec = pl.BlockSpec((b_tile, N, P), lambda bt, l: (bt, 0, 0))
    out_spec = pl.BlockSpec((b_tile, N, E), lambda bt, l: (bt, 0, 0))

    layer_arrs = [packed[k] for k in _LAYER_KEYS]
    in_arrs = [x_in, pos, rel_bias, packed["pw"], packed["pb"]] + layer_arrs
    in_specs = [x_spec, const_spec(pos.shape), const_spec(rel_bias.shape),
                const_spec(packed["pw"].shape), const_spec(packed["pb"].shape)]
    in_specs += [layer_spec(a.shape) for a in layer_arrs]

    return pl.pallas_call(
        partial(_vit_mla_kernel, num_heads=num_heads),
        out_shape=jax.ShapeDtypeStruct((B, N, E), jnp.float32),
        grid=grid,
        in_specs=in_specs,
        out_specs=out_spec,
        scratch_shapes=[pltpu.VMEM((b_tile, N, E), jnp.float32)],  # resident activations
        compiler_params=pltpu.CompilerParams(
            dimension_semantics=("parallel", "arbitrary"),
            vmem_limit_bytes=int(vmem_limit)),
    )(*in_arrs)


def out_projection(hidden, ow, ob, *, b_tile, vmem_limit):
    """Standalone vocab projection, tiled over batch and vocab."""
    B, N, E = hidden.shape
    V = ow.shape[1]
    v_tile = _pick_v_tile(V)
    grid = (B // b_tile, V // v_tile)
    return pl.pallas_call(
        _out_proj_kernel,
        out_shape=jax.ShapeDtypeStruct((B, N, V), jnp.float32),
        grid=grid,
        in_specs=[pl.BlockSpec((b_tile, N, E), lambda bt, vt: (bt, 0, 0)),
                  pl.BlockSpec((E, v_tile), lambda bt, vt: (0, vt)),
                  pl.BlockSpec((1, v_tile), lambda bt, vt: (0, vt))],
        out_specs=pl.BlockSpec((b_tile, N, v_tile), lambda bt, vt: (bt, 0, vt)),
        compiler_params=pltpu.CompilerParams(
            dimension_semantics=("parallel", "parallel"),
            vmem_limit_bytes=int(vmem_limit)),
    )(hidden, ow, ob)


# --------------------------- params & full forward ----------------------------

def init_params(key, *, patch_dim, num_patches, emb_dim, num_heads, latent_dim,
                num_layers, ffn_dim, vocab_size):
    del num_heads  # only used at forward/pack time
    keys = iter(jax.random.split(key, 64))

    def lin_p(din, dout):
        # weight stored as [in, out] == torch Linear weight.T ; bias as [1, out]
        w = jax.random.normal(next(keys), (din, dout), jnp.float32) * 0.02
        b = jnp.zeros((1, dout), jnp.float32)
        return (w, b)

    params = {
        "patch_proj": lin_p(patch_dim, emb_dim),
        "pos_emb": jax.random.normal(next(keys), (num_patches, emb_dim), jnp.float32) * 0.02,
        "rel_bias": jax.random.normal(next(keys), (num_patches, num_patches), jnp.float32) * 0.02,
        "out_proj": lin_p(emb_dim, vocab_size),
        "mask_token": jax.random.normal(next(keys), (patch_dim,), jnp.float32) * 0.02,
    }
    layers = []
    for _ in range(num_layers):
        layers.append(dict(
            wq=lin_p(emb_dim, emb_dim),
            wak=lin_p(emb_dim, latent_dim),
            wbk=lin_p(latent_dim, emb_dim),
            wav=lin_p(emb_dim, latent_dim),
            wbv=lin_p(latent_dim, emb_dim),
            proj_o=lin_p(emb_dim, emb_dim),
            ffn1=lin_p(emb_dim, ffn_dim),
            ffn2=lin_p(ffn_dim, emb_dim),
            norm1=(jnp.ones((1, emb_dim), jnp.float32), jnp.zeros((1, emb_dim), jnp.float32)),
            norm2=(jnp.ones((1, emb_dim), jnp.float32), jnp.zeros((1, emb_dim), jnp.float32)),
        ))
    params["layers"] = layers
    return params


def stacked_context_vit_mla(params, patches, *, num_heads, mask_rate=0.0, rng=None):
    """patches: [B, N, patch_dim] float32 in [0,1].  Returns (logits, mask)."""
    B, N, _ = patches.shape
    if mask_rate > 0.0:
        # TODO(synk): torch.rand RNG stream cannot be reproduced; uses jax.random.
        if rng is None:
            rng = jax.random.PRNGKey(0)
        mask = jax.random.uniform(rng, (B, N)) < mask_rate
    else:
        mask = jnp.zeros((B, N), dtype=bool)
    x_in = jnp.where(mask[..., None], params["mask_token"][None, None, :], patches)

    packed = pack_params(params, num_heads=num_heads)
    bias = params["rel_bias"][:N, :N]
    pos = params["pos_emb"][:N]

    E = pos.shape[1]
    LAT = packed["wak"].shape[2]
    FFN = packed["f1w"].shape[2]

    # Generation-aware budgets: v7x has 64 MiB VMEM, v5e/v6e 128 MiB.
    vmem_cap = _tpu_vmem_capacity_bytes()
    vmem_limit = min(vmem_cap * 4 // 5, 100 * 1024 * 1024)
    target_rows = 512 if vmem_cap <= 64 * 1024 * 1024 else 768

    # rough per-step budget: double-buffered bf16 layer weights + f32 intermediates
    layer_w_bytes = 2 * (2 * E * E + 2 * E * LAT + 2 * E * FFN)
    act_bytes_per_row = 4 * (16 * E + 2 * FFN + num_heads * N)
    act_budget = max(vmem_limit - 2 * layer_w_bytes - (1 << 20), 1 << 20)
    b_tile = _pick_b_tile(B, N, target_rows=target_rows,
                          act_bytes_per_row=act_bytes_per_row,
                          act_budget=act_budget)

    hidden = vit_mla_forward_hidden = vit_mla_hidden(
        packed, x_in, pos, bias, num_heads=num_heads,
        b_tile=b_tile, vmem_limit=vmem_limit)
    del vit_mla_forward_hidden
    logits = out_projection(hidden, packed["ow"], packed["ob"],
                            b_tile=b_tile, vmem_limit=vmem_limit)
    return logits, mask


# ------------------------------ pure-JAX reference ------------------------------

def _ln_ref(z, g, b, eps=1e-5):
    mu = jnp.mean(z, axis=-1, keepdims=True)
    var = jnp.mean((z - mu) ** 2, axis=-1, keepdims=True)
    return (z - mu) / jnp.sqrt(var + eps) * g + b


def reference_forward(params, x_in, *, num_heads):
    E = params["pos_emb"].shape[1]
    d = E // num_heads
    B, N, _ = x_in.shape
    x = x_in @ params["patch_proj"][0] + params["patch_proj"][1]
    x = x + params["pos_emb"][:N][None]
    bias = params["rel_bias"][:N, :N]
    for lp in params["layers"]:
        q = x @ lp["wq"][0] + lp["wq"][1]
        kc = x @ lp["wak"][0] + lp["wak"][1]
        vc = x @ lp["wav"][0] + lp["wav"][1]
        k = kc @ lp["wbk"][0] + lp["wbk"][1]
        v = vc @ lp["wbv"][0] + lp["wbv"][1]

        def heads(z):
            return z.reshape(B, N, num_heads, d).transpose(0, 2, 1, 3)
        qh, kh, vh = heads(q), heads(k), heads(v)
        s = qh @ kh.transpose(0, 1, 3, 2) / math.sqrt(d) + bias[None, None]
        p = jax.nn.softmax(s, axis=-1)
        o = (p @ vh).transpose(0, 2, 1, 3).reshape(B, N, E)
        o = o @ lp["proj_o"][0] + lp["proj_o"][1]
        x = _ln_ref(x + o, lp["norm1"][0], lp["norm1"][1])
        f = jax.nn.gelu(x @ lp["ffn1"][0] + lp["ffn1"][1], approximate=False)
        f = f @ lp["ffn2"][0] + lp["ffn2"][1]
        x = _ln_ref(x + f, lp["norm2"][0], lp["norm2"][1])
    return x @ params["out_proj"][0] + params["out_proj"][1]


# ----------------------------------- main --------------------------------------

if __name__ == "__main__":
    # small shapes consistent with the module
    B, N, P = 2, 8, 16            # batch, num_patches, patch_dim
    E, H, LAT = 32, 4, 16         # emb_dim, num_heads, latent_dim
    NUM_LAYERS, FFN, VOCAB = 2, 64, 16

    key = jax.random.PRNGKey(0)
    pkey, xkey = jax.random.split(key)
    params = init_params(pkey, patch_dim=P, num_patches=N, emb_dim=E, num_heads=H,
                         latent_dim=LAT, num_layers=NUM_LAYERS, ffn_dim=FFN,
                         vocab_size=VOCAB)
    patches = jax.random.uniform(xkey, (B, N, P), jnp.float32)  # values in [0,1]

    logits, mask = stacked_context_vit_mla(params, patches, num_heads=H, mask_rate=0.0)
    jax.block_until_ready(logits)
    jax.block_until_ready(mask)

    assert logits.shape == (B, N, VOCAB) and logits.dtype == jnp.float32
    assert mask.shape == (B, N) and mask.dtype == jnp.bool_
    assert bool(jnp.all(jnp.isfinite(logits)))

    # tolerance check vs pure-JAX f32 reference (bf16 matmuls + tanh GELU +
    # approx reciprocal account for the residual error)
    ref = reference_forward(params, patches, num_heads=H)
    max_err = float(jnp.max(jnp.abs(logits - ref)))
    assert max_err < 2e-2, f"logits mismatch vs reference: max abs err {max_err}"

    print("KERNEL_OK")
</pallas_src>

<mosaic_0001>
module attributes {stable_mosaic.version = 11 : i64} {
  func.func @_vit_mla_kernel(%arg0: i32, %arg1: i32, %arg2: memref<1x8x16xf32, #tpu.memory_space<vmem>>, %arg3: memref<8x32xf32, #tpu.memory_space<vmem>>, %arg4: memref<8x8xf32, #tpu.memory_space<vmem>>, %arg5: memref<16x32xbf16, #tpu.memory_space<vmem>>, %arg6: memref<1x32xf32, #tpu.memory_space<vmem>>, %arg7: memref<1x32x32xbf16, #tpu.memory_space<vmem>>, %arg8: memref<1x1x32xf32, #tpu.memory_space<vmem>>, %arg9: memref<1x32x16xbf16, #tpu.memory_space<vmem>>, %arg10: memref<1x1x16xf32, #tpu.memory_space<vmem>>, %arg11: memref<1x16x32xbf16, #tpu.memory_space<vmem>>, %arg12: memref<1x1x32xf32, #tpu.memory_space<vmem>>, %arg13: memref<1x32x16xbf16, #tpu.memory_space<vmem>>, %arg14: memref<1x1x16xf32, #tpu.memory_space<vmem>>, %arg15: memref<1x16x32xbf16, #tpu.memory_space<vmem>>, %arg16: memref<1x1x32xf32, #tpu.memory_space<vmem>>, %arg17: memref<1x32x32xbf16, #tpu.memory_space<vmem>>, %arg18: memref<1x1x32xf32, #tpu.memory_space<vmem>>, %arg19: memref<1x32x64xbf16, #tpu.memory_space<vmem>>, %arg20: memref<1x1x64xf32, #tpu.memory_space<vmem>>, %arg21: memref<1x64x32xbf16, #tpu.memory_space<vmem>>, %arg22: memref<1x1x32xf32, #tpu.memory_space<vmem>>, %arg23: memref<1x1x32xf32, #tpu.memory_space<vmem>>, %arg24: memref<1x1x32xf32, #tpu.memory_space<vmem>>, %arg25: memref<1x1x32xf32, #tpu.memory_space<vmem>>, %arg26: memref<1x1x32xf32, #tpu.memory_space<vmem>>, %arg27: memref<1x8x32xf32, #tpu.memory_space<vmem>>, %arg28: memref<1x8x32xf32, #tpu.memory_space<vmem>>) attributes {dimension_semantics = [#tpu.dimension_semantics<parallel>, #tpu.dimension_semantics<arbitrary>], iteration_bounds = array<i64: 2, 2>, scalar_prefetch = 0 : i64, scratch_operands = 1 : i64, tpu.core_type = #tpu.core_type<tc>, window_params = [{transform_indices = @transform_0, window_bounds = array<i64: 1, 8, 16>}, {pipeline_mode = #tpu.pipeline_mode<synchronous>, transform_indices = @transform_1, window_bounds = array<i64: 8, 32>}, {pipeline_mode = #tpu.pipeline_mode<synchronous>, transform_indices = @transform_2, window_bounds = array<i64: 8, 8>}, {pipeline_mode = #tpu.pipeline_mode<synchronous>, transform_indices = @transform_3, window_bounds = array<i64: 16, 32>}, {pipeline_mode = #tpu.pipeline_mode<synchronous>, transform_indices = @transform_4, window_bounds = array<i64: 1, 32>}, {transform_indices = @transform_5, window_bounds = array<i64: 1, 32, 32>}, {transform_indices = @transform_6, window_bounds = array<i64: 1, 1, 32>}, {transform_indices = @transform_7, window_bounds = array<i64: 1, 32, 16>}, {transform_indices = @transform_8, window_bounds = array<i64: 1, 1, 16>}, {transform_indices = @transform_9, window_bounds = array<i64: 1, 16, 32>}, {transform_indices = @transform_10, window_bounds = array<i64: 1, 1, 32>}, {transform_indices = @transform_11, window_bounds = array<i64: 1, 32, 16>}, {transform_indices = @transform_12, window_bounds = array<i64: 1, 1, 16>}, {transform_indices = @transform_13, window_bounds = array<i64: 1, 16, 32>}, {transform_indices = @transform_14, window_bounds = array<i64: 1, 1, 32>}, {transform_indices = @transform_15, window_bounds = array<i64: 1, 32, 32>}, {transform_indices = @transform_16, window_bounds = array<i64: 1, 1, 32>}, {transform_indices = @transform_17, window_bounds = array<i64: 1, 32, 64>}, {transform_indices = @transform_18, window_bounds = array<i64: 1, 1, 64>}, {transform_indices = @transform_19, window_bounds = array<i64: 1, 64, 32>}, {transform_indices = @transform_20, window_bounds = array<i64: 1, 1, 32>}, {transform_indices = @transform_21, window_bounds = array<i64: 1, 1, 32>}, {transform_indices = @transform_22, window_bounds = array<i64: 1, 1, 32>}, {transform_indices = @transform_23, window_bounds = array<i64: 1, 1, 32>}, {transform_indices = @transform_24, window_bounds = array<i64: 1, 1, 32>}, {transform_indices = @transform_25, window_bounds = array<i64: 1, 8, 32>}]} {
    %c0_i32 = arith.constant 0 : i32
    %0 = arith.cmpi eq, %arg1, %c0_i32 : i32
    %1 = arith.extui %0 : i1 to i32
    %c0_i32_0 = arith.constant 0 : i32
    %2 = arith.cmpi ne, %1, %c0_i32_0 : i32
    scf.if %2 {
      %c0_106 = arith.constant 0 : index
      %c0_107 = arith.constant 0 : index
      %c0_108 = arith.constant 0 : index
      %232 = vector.load %arg2[%c0_106, %c0_107, %c0_108] : memref<1x8x16xf32, #tpu.memory_space<vmem>>, vector<1x8x16xf32>
      %233 = vector.shape_cast %232 : vector<1x8x16xf32> to vector<8x16xf32>
      %234 = arith.truncf %233 : vector<8x16xf32> to vector<8x16xbf16>
      %c0_109 = arith.constant 0 : index
      %c0_110 = arith.constant 0 : index
      %235 = vector.load %arg5[%c0_109, %c0_110] : memref<16x32xbf16, #tpu.memory_space<vmem>>, vector<16x32xbf16>
      %cst_111 = arith.constant dense<0.000000e+00> : vector<8x32xf32>
      %236 = tpu.matmul %234, %235, %cst_111 {dimension_numbers = #tpu.dot_dimension_numbers<[1], [0], [0], [1], [0, 0, 1, 1], [], []>} : vector<8x16xbf16>, vector<16x32xbf16>, vector<8x32xf32> -> vector<8x32xf32>
      %c0_112 = arith.constant 0 : index
      %c0_113 = arith.constant 0 : index
      %237 = vector.load %arg6[%c0_112, %c0_113] : memref<1x32xf32, #tpu.memory_space<vmem>>, vector<1x32xf32>
      %238 = vector.broadcast %237 : vector<1x32xf32> to vector<8x32xf32>
      %239 = arith.addf %236, %238 : vector<8x32xf32>
      %240 = vector.shape_cast %239 : vector<8x32xf32> to vector<1x8x32xf32>
      %c0_114 = arith.constant 0 : index
      %c0_115 = arith.constant 0 : index
      %241 = vector.load %arg3[%c0_114, %c0_115] : memref<8x32xf32, #tpu.memory_space<vmem>>, vector<8x32xf32>
      %242 = vector.shape_cast %241 : vector<8x32xf32> to vector<1x8x32xf32>
      %243 = arith.addf %240, %242 : vector<1x8x32xf32>
      %c0_116 = arith.constant 0 : index
      %c0_117 = arith.constant 0 : index
      %c0_118 = arith.constant 0 : index
      %244 = vector.load %arg28[%c0_116, %c0_117, %c0_118] : memref<1x8x32xf32, #tpu.memory_space<vmem>>, vector<1x8x32xf32>
      tpu.vector_store %arg28[%c0_116, %c0_117, %c0_118], %243 {strides = array<i32>} : memref<1x8x32xf32, #tpu.memory_space<vmem>>, vector<1x8x32xf32>,
    } else {
    }
    %c0 = arith.constant 0 : index
    %c0_1 = arith.constant 0 : index
    %c0_2 = arith.constant 0 : index
    %3 = vector.load %arg28[%c0, %c0_1, %c0_2] : memref<1x8x32xf32, #tpu.memory_space<vmem>>, vector<1x8x32xf32>
    %4 = vector.shape_cast %3 : vector<1x8x32xf32> to vector<8x32xf32>
    %5 = arith.truncf %4 : vector<8x32xf32> to vector<8x32xbf16>
    %c0_3 = arith.constant 0 : index
    %c0_4 = arith.constant 0 : index
    %6 = vector.load %arg4[%c0_3, %c0_4] : memref<8x8xf32, #tpu.memory_space<vmem>>, vector<8x8xf32>
    %c0_5 = arith.constant 0 : index
    %c0_6 = arith.constant 0 : index
    %c0_7 = arith.constant 0 : index
    %7 = vector.load %arg7[%c0_5, %c0_6, %c0_7] : memref<1x32x32xbf16, #tpu.memory_space<vmem>>, vector<1x32x32xbf16>
    %8 = vector.shape_cast %7 : vector<1x32x32xbf16> to vector<32x32xbf16>
    %cst = arith.constant dense<0.000000e+00> : vector<8x32xf32>
    %9 = tpu.matmul %5, %8, %cst {dimension_numbers = #tpu.dot_dimension_numbers<[1], [0], [0], [1], [0, 0, 1, 1], [], []>} : vector<8x32xbf16>, vector<32x32xbf16>, vector<8x32xf32> -> vector<8x32xf32>
    %c0_8 = arith.constant 0 : index
    %c0_9 = arith.constant 0 : index
    %c0_10 = arith.constant 0 : index
    %10 = vector.load %arg8[%c0_8, %c0_9, %c0_10] : memref<1x1x32xf32, #tpu.memory_space<vmem>>, vector<1x1x32xf32>
    %11 = vector.shape_cast %10 : vector<1x1x32xf32> to vector<1x32xf32>
    %12 = vector.broadcast %11 : vector<1x32xf32> to vector<8x32xf32>
    %13 = arith.addf %9, %12 : vector<8x32xf32>
    %c0_11 = arith.constant 0 : index
    %c0_12 = arith.constant 0 : index
    %c0_13 = arith.constant 0 : index
    %14 = vector.load %arg9[%c0_11, %c0_12, %c0_13] : memref<1x32x16xbf16, #tpu.memory_space<vmem>>, vector<1x32x16xbf16>
    %15 = vector.shape_cast %14 : vector<1x32x16xbf16> to vector<32x16xbf16>
    %cst_14 = arith.constant dense<0.000000e+00> : vector<8x16xf32>
    %16 = tpu.matmul %5, %15, %cst_14 {dimension_numbers = #tpu.dot_dimension_numbers<[1], [0], [0], [1], [0, 0, 1, 1], [], []>} : vector<8x32xbf16>, vector<32x16xbf16>, vector<8x16xf32> -> vector<8x16xf32>
    %c0_15 = arith.constant 0 : index
    %c0_16 = arith.constant 0 : index
    %c0_17 = arith.constant 0 : index
    %17 = vector.load %arg10[%c0_15, %c0_16, %c0_17] : memref<1x1x16xf32, #tpu.memory_space<vmem>>, vector<1x1x16xf32>
    %18 = vector.shape_cast %17 : vector<1x1x16xf32> to vector<1x16xf32>
    %19 = vector.broadcast %18 : vector<1x16xf32> to vector<8x16xf32>
    %20 = arith.addf %16, %19 : vector<8x16xf32>
    %c0_18 = arith.constant 0 : index
    %c0_19 = arith.constant 0 : index
    %c0_20 = arith.constant 0 : index
    %21 = vector.load %arg13[%c0_18, %c0_19, %c0_20] : memref<1x32x16xbf16, #tpu.memory_space<vmem>>, vector<1x32x16xbf16>
    %22 = vector.shape_cast %21 : vector<1x32x16xbf16> to vector<32x16xbf16>
    %cst_21 = arith.constant dense<0.000000e+00> : vector<8x16xf32>
    %23 = tpu.matmul %5, %22, %cst_21 {dimension_numbers = #tpu.dot_dimension_numbers<[1], [0], [0], [1], [0, 0, 1, 1], [], []>} : vector<8x32xbf16>, vector<32x16xbf16>, vector<8x16xf32> -> vector<8x16xf32>
    %c0_22 = arith.constant 0 : index
    %c0_23 = arith.constant 0 : index
    %c0_24 = arith.constant 0 : index
    %24 = vector.load %arg14[%c0_22, %c0_23, %c0_24] : memref<1x1x16xf32, #tpu.memory_space<vmem>>, vector<1x1x16xf32>
    %25 = vector.shape_cast %24 : vector<1x1x16xf32> to vector<1x16xf32>
    %26 = vector.broadcast %25 : vector<1x16xf32> to vector<8x16xf32>
    %27 = arith.addf %23, %26 : vector<8x16xf32>
    %28 = arith.truncf %20 : vector<8x16xf32> to vector<8x16xbf16>
    %29 = arith.truncf %27 : vector<8x16xf32> to vector<8x16xbf16>
    %c0_25 = arith.constant 0 : index
    %c0_26 = arith.constant 0 : index
    %c0_27 = arith.constant 0 : index
    %30 = vector.load %arg11[%c0_25, %c0_26, %c0_27] : memref<1x16x32xbf16, #tpu.memory_space<vmem>>, vector<1x16x32xbf16>
    %31 = vector.shape_cast %30 : vector<1x16x32xbf16> to vector<16x32xbf16>
    %cst_28 = arith.constant dense<0.000000e+00> : vector<8x32xf32>
    %32 = tpu.matmul %28, %31, %cst_28 {dimension_numbers = #tpu.dot_dimension_numbers<[1], [0], [0], [1], [0, 0, 1, 1], [], []>} : vector<8x16xbf16>, vector<16x32xbf16>, vector<8x32xf32> -> vector<8x32xf32>
    %c0_29 = arith.constant 0 : index
    %c0_30 = arith.constant 0 : index
    %c0_31 = arith.constant 0 : index
    %33 = vector.load %arg12[%c0_29, %c0_30, %c0_31] : memref<1x1x32xf32, #tpu.memory_space<vmem>>, vector<1x1x32xf32>
    %34 = vector.shape_cast %33 : vector<1x1x32xf32> to vector<1x32xf32>
    %35 = vector.broadcast %34 : vector<1x32xf32> to vector<8x32xf32>
    %36 = arith.addf %32, %35 : vector<8x32xf32>
    %c0_32 = arith.constant 0 : index
    %c0_33 = arith.constant 0 : index
    %c0_34 = arith.constant 0 : index
    %37 = vector.load %arg15[%c0_32, %c0_33, %c0_34] : memref<1x16x32xbf16, #tpu.memory_space<vmem>>, vector<1x16x32xbf16>
    %38 = vector.shape_cast %37 : vector<1x16x32xbf16> to vector<16x32xbf16>
    %cst_35 = arith.constant dense<0.000000e+00> : vector<8x32xf32>
    %39 = tpu.matmul %29, %38, %cst_35 {dimension_numbers = #tpu.dot_dimension_numbers<[1], [0], [0], [1], [0, 0, 1, 1], [], []>} : vector<8x16xbf16>, vector<16x32xbf16>, vector<8x32xf32> -> vector<8x32xf32>
    %c0_36 = arith.constant 0 : index
    %c0_37 = arith.constant 0 : index
    %c0_38 = arith.constant 0 : index
    %40 = vector.load %arg16[%c0_36, %c0_37, %c0_38] : memref<1x1x32xf32, #tpu.memory_space<vmem>>, vector<1x1x32xf32>
    %41 = vector.shape_cast %40 : vector<1x1x32xf32> to vector<1x32xf32>
    %42 = vector.broadcast %41 : vector<1x32xf32> to vector<8x32xf32>
    %43 = arith.addf %39, %42 : vector<8x32xf32>
    %44 = arith.truncf %13 : vector<8x32xf32> to vector<8x32xbf16>
    %45 = arith.truncf %36 : vector<8x32xf32> to vector<8x32xbf16>
    %46 = arith.truncf %43 : vector<8x32xf32> to vector<8x32xbf16>
    %47 = vector.extract_strided_slice %44 {offsets = [0, 0], sizes = [8, 8], strides = [1, 1]} : vector<8x32xbf16> to vector<8x8xbf16>
    %48 = vector.shape_cast %47 : vector<8x8xbf16> to vector<1x8x8xbf16>
    %49 = vector.extract_strided_slice %45 {offsets = [0, 0], sizes = [8, 8], strides = [1, 1]} : vector<8x32xbf16> to vector<8x8xbf16>
    %50 = vector.shape_cast %49 : vector<8x8xbf16> to vector<1x8x8xbf16>
    %51 = vector.extract_strided_slice %46 {offsets = [0, 0], sizes = [8, 8], strides = [1, 1]} : vector<8x32xbf16> to vector<8x8xbf16>
    %52 = vector.shape_cast %51 : vector<8x8xbf16> to vector<1x8x8xbf16>
    "tpu.trace_start"() <{level = 10 : i32, message = "bnd,bmd->bnm"}> : () -> ()
    %cst_39 = arith.constant dense<0.000000e+00> : vector<1x8x8xf32>
    %53 = tpu.matmul %48, %50, %cst_39 {dimension_numbers = #tpu.dot_dimension_numbers<[2], [2], [1], [1], [0, 0, 0, 1, 1, 1], [0], [0]>} : vector<1x8x8xbf16>, vector<1x8x8xbf16>, vector<1x8x8xf32> -> vector<1x8x8xf32>
    "tpu.trace_stop"() : () -> ()
    %54 = vector.shape_cast %6 : vector<8x8xf32> to vector<1x8x8xf32>
    %55 = arith.addf %53, %54 : vector<1x8x8xf32>
    %cst_40 = arith.constant dense<0xFF800000> : vector<1x8xf32>
    %56 = vector.multi_reduction <maximumf>, %55, %cst_40 [2] : vector<1x8x8xf32> to vector<1x8xf32>
    %57 = vector.shape_cast %56 : vector<1x8xf32> to vector<1x8x1xf32>
    %58 = vector.broadcast %57 : vector<1x8x1xf32> to vector<1x8x8xf32>
    %59 = arith.subf %55, %58 : vector<1x8x8xf32>
    %60 = math.exp %59 : vector<1x8x8xf32>
    %cst_41 = arith.constant dense<0.000000e+00> : vector<1x8xf32>
    %61 = vector.multi_reduction <add>, %60, %cst_41 [2] : vector<1x8x8xf32> to vector<1x8xf32>
    %62 = vector.shape_cast %61 : vector<1x8xf32> to vector<1x8x1xf32>
    %63 = tpu.reciprocal %62 {approx = true} : vector<1x8x1xf32> -> vector<1x8x1xf32>
    %64 = vector.broadcast %63 : vector<1x8x1xf32> to vector<1x8x8xf32>
    %65 = arith.mulf %60, %64 : vector<1x8x8xf32>
    %66 = arith.truncf %65 : vector<1x8x8xf32> to vector<1x8x8xbf16>
    "tpu.trace_start"() <{level = 10 : i32, message = "bnm,bmd->bnd"}> : () -> ()
    %cst_42 = arith.constant dense<0.000000e+00> : vector<1x8x8xf32>
    %67 = tpu.matmul %66, %52, %cst_42 {dimension_numbers = #tpu.dot_dimension_numbers<[2], [1], [1], [2], [0, 0, 0, 1, 1, 2], [0], [0]>} : vector<1x8x8xbf16>, vector<1x8x8xbf16>, vector<1x8x8xf32> -> vector<1x8x8xf32>
    "tpu.trace_stop"() : () -> ()
    %68 = vector.shape_cast %67 : vector<1x8x8xf32> to vector<8x8xf32>
    %69 = vector.extract_strided_slice %44 {offsets = [0, 8], sizes = [8, 8], strides = [1, 1]} : vector<8x32xbf16> to vector<8x8xbf16>
    %70 = vector.shape_cast %69 : vector<8x8xbf16> to vector<1x8x8xbf16>
    %71 = vector.extract_strided_slice %45 {offsets = [0, 8], sizes = [8, 8], strides = [1, 1]} : vector<8x32xbf16> to vector<8x8xbf16>
    %72 = vector.shape_cast %71 : vector<8x8xbf16> to vector<1x8x8xbf16>
    %73 = vector.extract_strided_slice %46 {offsets = [0, 8], sizes = [8, 8], strides = [1, 1]} : vector<8x32xbf16> to vector<8x8xbf16>
    %74 = vector.shape_cast %73 : vector<8x8xbf16> to vector<1x8x8xbf16>
    "tpu.trace_start"() <{level = 10 : i32, message = "bnd,bmd->bnm"}> : () -> ()
    %cst_43 = arith.constant dense<0.000000e+00> : vector<1x8x8xf32>
    %75 = tpu.matmul %70, %72, %cst_43 {dimension_numbers = #tpu.dot_dimension_numbers<[2], [2], [1], [1], [0, 0, 0, 1, 1, 1], [0], [0]>} : vector<1x8x8xbf16>, vector<1x8x8xbf16>, vector<1x8x8xf32> -> vector<1x8x8xf32>
    "tpu.trace_stop"() : () -> ()
    %76 = vector.shape_cast %6 : vector<8x8xf32> to vector<1x8x8xf32>
    %77 = arith.addf %75, %76 : vector<1x8x8xf32>
    %cst_44 = arith.constant dense<0xFF800000> : vector<1x8xf32>
    %78 = vector.multi_reduction <maximumf>, %77, %cst_44 [2] : vector<1x8x8xf32> to vector<1x8xf32>
    %79 = vector.shape_cast %78 : vector<1x8xf32> to vector<1x8x1xf32>
    %80 = vector.broadcast %79 : vector<1x8x1xf32> to vector<1x8x8xf32>
    %81 = arith.subf %77, %80 : vector<1x8x8xf32>
    %82 = math.exp %81 : vector<1x8x8xf32>
    %cst_45 = arith.constant dense<0.000000e+00> : vector<1x8xf32>
    %83 = vector.multi_reduction <add>, %82, %cst_45 [2] : vector<1x8x8xf32> to vector<1x8xf32>
    %84 = vector.shape_cast %83 : vector<1x8xf32> to vector<1x8x1xf32>
    %85 = tpu.reciprocal %84 {approx = true} : vector<1x8x1xf32> -> vector<1x8x1xf32>
    %86 = vector.broadcast %85 : vector<1x8x1xf32> to vector<1x8x8xf32>
    %87 = arith.mulf %82, %86 : vector<1x8x8xf32>
    %88 = arith.truncf %87 : vector<1x8x8xf32> to vector<1x8x8xbf16>
    "tpu.trace_start"() <{level = 10 : i32, message = "bnm,bmd->bnd"}> : () -> ()
    %cst_46 = arith.constant dense<0.000000e+00> : vector<1x8x8xf32>
    %89 = tpu.matmul %88, %74, %cst_46 {dimension_numbers = #tpu.dot_dimension_numbers<[2], [1], [1], [2], [0, 0, 0, 1, 1, 2], [0], [0]>} : vector<1x8x8xbf16>, vector<1x8x8xbf16>, vector<1x8x8xf32> -> vector<1x8x8xf32>
    "tpu.trace_stop"() : () -> ()
    %90 = vector.shape_cast %89 : vector<1x8x8xf32> to vector<8x8xf32>
    %91 = vector.extract_strided_slice %44 {offsets = [0, 16], sizes = [8, 8], strides = [1, 1]} : vector<8x32xbf16> to vector<8x8xbf16>
    %92 = vector.shape_cast %91 : vector<8x8xbf16> to vector<1x8x8xbf16>
    %93 = vector.extract_strided_slice %45 {offsets = [0, 16], sizes = [8, 8], strides = [1, 1]} : vector<8x32xbf16> to vector<8x8xbf16>
    %94 = vector.shape_cast %93 : vector<8x8xbf16> to vector<1x8x8xbf16>
    %95 = vector.extract_strided_slice %46 {offsets = [0, 16], sizes = [8, 8], strides = [1, 1]} : vector<8x32xbf16> to vector<8x8xbf16>
    %96 = vector.shape_cast %95 : vector<8x8xbf16> to vector<1x8x8xbf16>
    "tpu.trace_start"() <{level = 10 : i32, message = "bnd,bmd->bnm"}> : () -> ()
    %cst_47 = arith.constant dense<0.000000e+00> : vector<1x8x8xf32>
    %97 = tpu.matmul %92, %94, %cst_47 {dimension_numbers = #tpu.dot_dimension_numbers<[2], [2], [1], [1], [0, 0, 0, 1, 1, 1], [0], [0]>} : vector<1x8x8xbf16>, vector<1x8x8xbf16>, vector<1x8x8xf32> -> vector<1x8x8xf32>
    "tpu.trace_stop"() : () -> ()
    %98 = vector.shape_cast %6 : vector<8x8xf32> to vector<1x8x8xf32>
    %99 = arith.addf %97, %98 : vector<1x8x8xf32>
    %cst_48 = arith.constant dense<0xFF800000> : vector<1x8xf32>
    %100 = vector.multi_reduction <maximumf>, %99, %cst_48 [2] : vector<1x8x8xf32> to vector<1x8xf32>
    %101 = vector.shape_cast %100 : vector<1x8xf32> to vector<1x8x1xf32>
    %102 = vector.broadcast %101 : vector<1x8x1xf32> to vector<1x8x8xf32>
    %103 = arith.subf %99, %102 : vector<1x8x8xf32>
    %104 = math.exp %103 : vector<1x8x8xf32>
    %cst_49 = arith.constant dense<0.000000e+00> : vector<1x8xf32>
    %105 = vector.multi_reduction <add>, %104, %cst_49 [2] : vector<1x8x8xf32> to vector<1x8xf32>
    %106 = vector.shape_cast %105 : vector<1x8xf32> to vector<1x8x1xf32>
    %107 = tpu.reciprocal %106 {approx = true} : vector<1x8x1xf32> -> vector<1x8x1xf32>
    %108 = vector.broadcast %107 : vector<1x8x1xf32> to vector<1x8x8xf32>
    %109 = arith.mulf %104, %108 : vector<1x8x8xf32>
    %110 = arith.truncf %109 : vector<1x8x8xf32> to vector<1x8x8xbf16>
    "tpu.trace_start"() <{level = 10 : i32, message = "bnm,bmd->bnd"}> : () -> ()
    %cst_50 = arith.constant dense<0.000000e+00> : vector<1x8x8xf32>
    %111 = tpu.matmul %110, %96, %cst_50 {dimension_numbers = #tpu.dot_dimension_numbers<[2], [1], [1], [2], [0, 0, 0, 1, 1, 2], [0], [0]>} : vector<1x8x8xbf16>, vector<1x8x8xbf16>, vector<1x8x8xf32> -> vector<1x8x8xf32>
    "tpu.trace_stop"() : () -> ()
    %112 = vector.shape_cast %111 : vector<1x8x8xf32> to vector<8x8xf32>
    %113 = vector.extract_strided_slice %44 {offsets = [0, 24], sizes = [8, 8], strides = [1, 1]} : vector<8x32xbf16> to vector<8x8xbf16>
    %114 = vector.shape_cast %113 : vector<8x8xbf16> to vector<1x8x8xbf16>
    %115 = vector.extract_strided_slice %45 {offsets = [0, 24], sizes = [8, 8], strides = [1, 1]} : vector<8x32xbf16> to vector<8x8xbf16>
    %116 = vector.shape_cast %115 : vector<8x8xbf16> to vector<1x8x8xbf16>
    %117 = vector.extract_strided_slice %46 {offsets = [0, 24], sizes = [8, 8], strides = [1, 1]} : vector<8x32xbf16> to vector<8x8xbf16>
    %118 = vector.shape_cast %117 : vector<8x8xbf16> to vector<1x8x8xbf16>
    "tpu.trace_start"() <{level = 10 : i32, message = "bnd,bmd->bnm"}> : () -> ()
    %cst_51 = arith.constant dense<0.000000e+00> : vector<1x8x8xf32>
    %119 = tpu.matmul %114, %116, %cst_51 {dimension_numbers = #tpu.dot_dimension_numbers<[2], [2], [1], [1], [0, 0, 0, 1, 1, 1], [0], [0]>} : vector<1x8x8xbf16>, vector<1x8x8xbf16>, vector<1x8x8xf32> -> vector<1x8x8xf32>
    "tpu.trace_stop"() : () -> ()
    %120 = vector.shape_cast %6 : vector<8x8xf32> to vector<1x8x8xf32>
    %121 = arith.addf %119, %120 : vector<1x8x8xf32>
    %cst_52 = arith.constant dense<0xFF800000> : vector<1x8xf32>
    %122 = vector.multi_reduction <maximumf>, %121, %cst_52 [2] : vector<1x8x8xf32> to vector<1x8xf32>
    %123 = vector.shape_cast %122 : vector<1x8xf32> to vector<1x8x1xf32>
    %124 = vector.broadcast %123 : vector<1x8x1xf32> to vector<1x8x8xf32>
    %125 = arith.subf %121, %124 : vector<1x8x8xf32>
    %126 = math.exp %125 : vector<1x8x8xf32>
    %cst_53 = arith.constant dense<0.000000e+00> : vector<1x8xf32>
    %127 = vector.multi_reduction <add>, %126, %cst_53 [2] : vector<1x8x8xf32> to vector<1x8xf32>
    %128 = vector.shape_cast %127 : vector<1x8xf32> to vector<1x8x1xf32>
    %129 = tpu.reciprocal %128 {approx = true} : vector<1x8x1xf32> -> vector<1x8x1xf32>
    %130 = vector.broadcast %129 : vector<1x8x1xf32> to vector<1x8x8xf32>
    %131 = arith.mulf %126, %130 : vector<1x8x8xf32>
    %132 = arith.truncf %131 : vector<1x8x8xf32> to vector<1x8x8xbf16>
    "tpu.trace_start"() <{level = 10 : i32, message = "bnm,bmd->bnd"}> : () -> ()
    %cst_54 = arith.constant dense<0.000000e+00> : vector<1x8x8xf32>
    %133 = tpu.matmul %132, %118, %cst_54 {dimension_numbers = #tpu.dot_dimension_numbers<[2], [1], [1], [2], [0, 0, 0, 1, 1, 2], [0], [0]>} : vector<1x8x8xbf16>, vector<1x8x8xbf16>, vector<1x8x8xf32> -> vector<1x8x8xf32>
    "tpu.trace_stop"() : () -> ()
    %134 = vector.shape_cast %133 : vector<1x8x8xf32> to vector<8x8xf32>
    %135 = tpu.concatenate %68, %90, %112, %134 in 1 : vector<8x8xf32>, vector<8x8xf32>, vector<8x8xf32>, vector<8x8xf32> -> vector<8x32xf32>
    %136 = arith.truncf %135 : vector<8x32xf32> to vector<8x32xbf16>
    %c0_55 = arith.constant 0 : index
    %c0_56 = arith.constant 0 : index
    %c0_57 = arith.constant 0 : index
    %137 = vector.load %arg17[%c0_55, %c0_56, %c0_57] : memref<1x32x32xbf16, #tpu.memory_space<vmem>>, vector<1x32x32xbf16>
    %138 = vector.shape_cast %137 : vector<1x32x32xbf16> to vector<32x32xbf16>
    %cst_58 = arith.constant dense<0.000000e+00> : vector<8x32xf32>
    %139 = tpu.matmul %136, %138, %cst_58 {dimension_numbers = #tpu.dot_dimension_numbers<[1], [0], [0], [1], [0, 0, 1, 1], [], []>} : vector<8x32xbf16>, vector<32x32xbf16>, vector<8x32xf32> -> vector<8x32xf32>
    %c0_59 = arith.constant 0 : index
    %c0_60 = arith.constant 0 : index
    %c0_61 = arith.constant 0 : index
    %140 = vector.load %arg18[%c0_59, %c0_60, %c0_61] : memref<1x1x32xf32, #tpu.memory_space<vmem>>, vector<1x1x32xf32>
    %141 = vector.shape_cast %140 : vector<1x1x32xf32> to vector<1x32xf32>
    %142 = vector.broadcast %141 : vector<1x32xf32> to vector<8x32xf32>
    %143 = arith.addf %139, %142 : vector<8x32xf32>
    %144 = arith.addf %4, %143 : vector<8x32xf32>
    %c0_62 = arith.constant 0 : index
    %c0_63 = arith.constant 0 : index
    %c0_64 = arith.constant 0 : index
    %145 = vector.load %arg23[%c0_62, %c0_63, %c0_64] : memref<1x1x32xf32, #tpu.memory_space<vmem>>, vector<1x1x32xf32>
    %146 = vector.shape_cast %145 : vector<1x1x32xf32> to vector<1x32xf32>
    %c0_65 = arith.constant 0 : index
    %c0_66 = arith.constant 0 : index
    %c0_67 = arith.constant 0 : index
    %147 = vector.load %arg24[%c0_65, %c0_66, %c0_67] : memref<1x1x32xf32, #tpu.memory_space<vmem>>, vector<1x1x32xf32>
    %148 = vector.shape_cast %147 : vector<1x1x32xf32> to vector<1x32xf32>
    %cst_68 = arith.constant dense<0.000000e+00> : vector<8xf32>
    %149 = vector.multi_reduction <add>, %144, %cst_68 [1] : vector<8x32xf32> to vector<8xf32>
    %150 = vector.shape_cast %149 : vector<8xf32> to vector<8x1xf32>
    %cst_69 = arith.constant 3.200000e+01 : f32
    %151 = vector.broadcast %cst_69 : f32 to vector<8x1xf32>
    %152 = arith.divf %150, %151 : vector<8x1xf32>
    %153 = vector.broadcast %152 : vector<8x1xf32> to vector<8x32xf32>
    %154 = arith.subf %144, %153 : vector<8x32xf32>
    %155 = arith.mulf %154, %154 : vector<8x32xf32>
    %cst_70 = arith.constant dense<0.000000e+00> : vector<8xf32>
    %156 = vector.multi_reduction <add>, %155, %cst_70 [1] : vector<8x32xf32> to vector<8xf32>
    %157 = vector.shape_cast %156 : vector<8xf32> to vector<8x1xf32>
    %cst_71 = arith.constant 3.200000e+01 : f32
    %158 = vector.broadcast %cst_71 : f32 to vector<8x1xf32>
    %159 = arith.divf %157, %158 : vector<8x1xf32>
    %160 = vector.broadcast %152 : vector<8x1xf32> to vector<8x32xf32>
    %161 = arith.subf %144, %160 : vector<8x32xf32>
    %cst_72 = arith.constant 9.99999974E-6 : f32
    %162 = vector.broadcast %cst_72 : f32 to vector<8x1xf32>
    %163 = arith.addf %159, %162 : vector<8x1xf32>
    %164 = math.rsqrt %163 : vector<8x1xf32>
    %165 = vector.broadcast %164 : vector<8x1xf32> to vector<8x32xf32>
    %166 = arith.mulf %161, %165 : vector<8x32xf32>
    %167 = vector.broadcast %146 : vector<1x32xf32> to vector<8x32xf32>
    %168 = arith.mulf %166, %167 : vector<8x32xf32>
    %169 = vector.broadcast %148 : vector<1x32xf32> to vector<8x32xf32>
    %170 = arith.addf %168, %169 : vector<8x32xf32>
    %171 = arith.truncf %170 : vector<8x32xf32> to vector<8x32xbf16>
    %c0_73 = arith.constant 0 : index
    %c0_74 = arith.constant 0 : index
    %c0_75 = arith.constant 0 : index
    %172 = vector.load %arg19[%c0_73, %c0_74, %c0_75] : memref<1x32x64xbf16, #tpu.memory_space<vmem>>, vector<1x32x64xbf16>
    %173 = vector.shape_cast %172 : vector<1x32x64xbf16> to vector<32x64xbf16>
    %cst_76 = arith.constant dense<0.000000e+00> : vector<8x64xf32>
    %174 = tpu.matmul %171, %173, %cst_76 {dimension_numbers = #tpu.dot_dimension_numbers<[1], [0], [0], [1], [0, 0, 1, 1], [], []>} : vector<8x32xbf16>, vector<32x64xbf16>, vector<8x64xf32> -> vector<8x64xf32>
    %c0_77 = arith.constant 0 : index
    %c0_78 = arith.constant 0 : index
    %c0_79 = arith.constant 0 : index
    %175 = vector.load %arg20[%c0_77, %c0_78, %c0_79] : memref<1x1x64xf32, #tpu.memory_space<vmem>>, vector<1x1x64xf32>
    %176 = vector.shape_cast %175 : vector<1x1x64xf32> to vector<1x64xf32>
    %177 = vector.broadcast %176 : vector<1x64xf32> to vector<8x64xf32>
    %178 = arith.addf %174, %177 : vector<8x64xf32>
    %cst_80 = arith.constant 5.000000e-01 : f32
    %179 = vector.broadcast %cst_80 : f32 to vector<8x64xf32>
    %180 = arith.mulf %179, %178 : vector<8x64xf32>
    %cst_81 = arith.constant 4.471500e-02 : f32
    %181 = vector.broadcast %cst_81 : f32 to vector<8x64xf32>
    %182 = arith.mulf %181, %178 : vector<8x64xf32>
    %183 = arith.mulf %182, %178 : vector<8x64xf32>
    %184 = arith.mulf %183, %178 : vector<8x64xf32>
    %185 = arith.addf %178, %184 : vector<8x64xf32>
    %cst_82 = arith.constant 0.797884583 : f32
    %186 = vector.broadcast %cst_82 : f32 to vector<8x64xf32>
    %187 = arith.mulf %186, %185 : vector<8x64xf32>
    %188 = math.tanh %187 : vector<8x64xf32>
    %cst_83 = arith.constant 1.000000e+00 : f32
    %189 = vector.broadcast %cst_83 : f32 to vector<8x64xf32>
    %190 = arith.addf %189, %188 : vector<8x64xf32>
    %191 = arith.mulf %180, %190 : vector<8x64xf32>
    %192 = arith.truncf %191 : vector<8x64xf32> to vector<8x64xbf16>
    %c0_84 = arith.constant 0 : index
    %c0_85 = arith.constant 0 : index
    %c0_86 = arith.constant 0 : index
    %193 = vector.load %arg21[%c0_84, %c0_85, %c0_86] : memref<1x64x32xbf16, #tpu.memory_space<vmem>>, vector<1x64x32xbf16>
    %194 = vector.shape_cast %193 : vector<1x64x32xbf16> to vector<64x32xbf16>
    %cst_87 = arith.constant dense<0.000000e+00> : vector<8x32xf32>
    %195 = tpu.matmul %192, %194, %cst_87 {dimension_numbers = #tpu.dot_dimension_numbers<[1], [0], [0], [1], [0, 0, 1, 1], [], []>} : vector<8x64xbf16>, vector<64x32xbf16>, vector<8x32xf32> -> vector<8x32xf32>
    %c0_88 = arith.constant 0 : index
    %c0_89 = arith.constant 0 : index
    %c0_90 = arith.constant 0 : index
    %196 = vector.load %arg22[%c0_88, %c0_89, %c0_90] : memref<1x1x32xf32, #tpu.memory_space<vmem>>, vector<1x1x32xf32>
    %197 = vector.shape_cast %196 : vector<1x1x32xf32> to vector<1x32xf32>
    %198 = vector.broadcast %197 : vector<1x32xf32> to vector<8x32xf32>
    %199 = arith.addf %195, %198 : vector<8x32xf32>
    %200 = arith.addf %170, %199 : vector<8x32xf32>
    %c0_91 = arith.constant 0 : index
    %c0_92 = arith.constant 0 : index
    %c0_93 = arith.constant 0 : index
    %201 = vector.load %arg25[%c0_91, %c0_92, %c0_93] : memref<1x1x32xf32, #tpu.memory_space<vmem>>, vector<1x1x32xf32>
    %202 = vector.shape_cast %201 : vector<1x1x32xf32> to vector<1x32xf32>
    %c0_94 = arith.constant 0 : index
    %c0_95 = arith.constant 0 : index
    %c0_96 = arith.constant 0 : index
    %203 = vector.load %arg26[%c0_94, %c0_95, %c0_96] : memref<1x1x32xf32, #tpu.memory_space<vmem>>, vector<1x1x32xf32>
    %204 = vector.shape_cast %203 : vector<1x1x32xf32> to vector<1x32xf32>
    %cst_97 = arith.constant dense<0.000000e+00> : vector<8xf32>
    %205 = vector.multi_reduction <add>, %200, %cst_97 [1] : vector<8x32xf32> to vector<8xf32>
    %206 = vector.shape_cast %205 : vector<8xf32> to vector<8x1xf32>
    %cst_98 = arith.constant 3.200000e+01 : f32
    %207 = vector.broadcast %cst_98 : f32 to vector<8x1xf32>
    %208 = arith.divf %206, %207 : vector<8x1xf32>
    %209 = vector.broadcast %208 : vector<8x1xf32> to vector<8x32xf32>
    %210 = arith.subf %200, %209 : vector<8x32xf32>
    %211 = arith.mulf %210, %210 : vector<8x32xf32>
    %cst_99 = arith.constant dense<0.000000e+00> : vector<8xf32>
    %212 = vector.multi_reduction <add>, %211, %cst_99 [1] : vector<8x32xf32> to vector<8xf32>
    %213 = vector.shape_cast %212 : vector<8xf32> to vector<8x1xf32>
    %cst_100 = arith.constant 3.200000e+01 : f32
    %214 = vector.broadcast %cst_100 : f32 to vector<8x1xf32>
    %215 = arith.divf %213, %214 : vector<8x1xf32>
    %216 = vector.broadcast %208 : vector<8x1xf32> to vector<8x32xf32>
    %217 = arith.subf %200, %216 : vector<8x32xf32>
    %cst_101 = arith.constant 9.99999974E-6 : f32
    %218 = vector.broadcast %cst_101 : f32 to vector<8x1xf32>
    %219 = arith.addf %215, %218 : vector<8x1xf32>
    %220 = math.rsqrt %219 : vector<8x1xf32>
    %221 = vector.broadcast %220 : vector<8x1xf32> to vector<8x32xf32>
    %222 = arith.mulf %217, %221 : vector<8x32xf32>
    %223 = vector.broadcast %202 : vector<1x32xf32> to vector<8x32xf32>
    %224 = arith.mulf %222, %223 : vector<8x32xf32>
    %225 = vector.broadcast %204 : vector<1x32xf32> to vector<8x32xf32>
    %226 = arith.addf %224, %225 : vector<8x32xf32>
    %227 = vector.shape_cast %226 : vector<8x32xf32> to vector<1x8x32xf32>
    %c0_102 = arith.constant 0 : index
    %c0_103 = arith.constant 0 : index
    %c0_104 = arith.constant 0 : index
    %228 = vector.load %arg28[%c0_102, %c0_103, %c0_104] : memref<1x8x32xf32, #tpu.memory_space<vmem>>, vector<1x8x32xf32>
    tpu.vector_store %arg28[%c0_102, %c0_103, %c0_104], %227 {strides = array<i32>} : memref<1x8x32xf32, #tpu.memory_space<vmem>>, vector<1x8x32xf32>,
    %c1_i32 = arith.constant 1 : i32
    %229 = arith.cmpi eq, %arg1, %c1_i32 : i32
    %230 = arith.extui %229 : i1 to i32
    %c0_i32_105 = arith.constant 0 : i32
    %231 = arith.cmpi ne, %230, %c0_i32_105 : i32
    scf.if %231 {
      %232 = vector.shape_cast %226 : vector<8x32xf32> to vector<1x8x32xf32>
      %c0_106 = arith.constant 0 : index
      %c0_107 = arith.constant 0 : index
      %c0_108 = arith.constant 0 : index
      %233 = vector.load %arg27[%c0_106, %c0_107, %c0_108] : memref<1x8x32xf32, #tpu.memory_space<vmem>>, vector<1x8x32xf32>
      tpu.vector_store %arg27[%c0_106, %c0_107, %c0_108], %232 {strides = array<i32>} : memref<1x8x32xf32, #tpu.memory_space<vmem>>, vector<1x8x32xf32>,
    } else {
    }
    return
  }
  func.func @transform_0(%arg0: i32, %arg1: i32) -> (i32, i32, i32) {
    %c0_i32 = arith.constant 0 : i32
    %c0_i32_0 = arith.constant 0 : i32
    %c0_i32_1 = arith.constant 0 : i32
    return %arg0, %c0_i32, %c0_i32_0 : i32, i32, i32
  }
  func.func @transform_1(%arg0: i32, %arg1: i32) -> (i32, i32) {
    %c0_i32 = arith.constant 0 : i32
    %c0_i32_0 = arith.constant 0 : i32
    %c0_i32_1 = arith.constant 0 : i32
    return %c0_i32, %c0_i32_0 : i32, i32
  }
  func.func @transform_2(%arg0: i32, %arg1: i32) -> (i32, i32) {
    %c0_i32 = arith.constant 0 : i32
    %c0_i32_0 = arith.constant 0 : i32
    %c0_i32_1 = arith.constant 0 : i32
    return %c0_i32, %c0_i32_0 : i32, i32
  }
  func.func @transform_3(%arg0: i32, %arg1: i32) -> (i32, i32) {
    %c0_i32 = arith.constant 0 : i32
    %c0_i32_0 = arith.constant 0 : i32
    %c0_i32_1 = arith.constant 0 : i32
    return %c0_i32, %c0_i32_0 : i32, i32
  }
  func.func @transform_4(%arg0: i32, %arg1: i32) -> (i32, i32) {
    %c0_i32 = arith.constant 0 : i32
    %c0_i32_0 = arith.constant 0 : i32
    %c0_i32_1 = arith.constant 0 : i32
    return %c0_i32, %c0_i32_0 : i32, i32
  }
  func.func @transform_5(%arg0: i32, %arg1: i32) -> (i32, i32, i32) {
    %c0_i32 = arith.constant 0 : i32
    %c0_i32_0 = arith.constant 0 : i32
    %c0_i32_1 = arith.constant 0 : i32
    return %arg1, %c0_i32, %c0_i32_0 : i32, i32, i32
  }
  func.func @transform_6(%arg0: i32, %arg1: i32) -> (i32, i32, i32) {
    %c0_i32 = arith.constant 0 : i32
    %c0_i32_0 = arith.constant 0 : i32
    %c0_i32_1 = arith.constant 0 : i32
    return %arg1, %c0_i32, %c0_i32_0 : i32, i32, i32
  }
  func.func @transform_7(%arg0: i32, %arg1: i32) -> (i32, i32, i32) {
    %c0_i32 = arith.constant 0 : i32
    %c0_i32_0 = arith.constant 0 : i32
    %c0_i32_1 = arith.constant 0 : i32
    return %arg1, %c0_i32, %c0_i32_0 : i32, i32, i32
  }
  func.func @transform_8(%arg0: i32, %arg1: i32) -> (i32, i32, i32) {
    %c0_i32 = arith.constant 0 : i32
    %c0_i32_0 = arith.constant 0 : i32
    %c0_i32_1 = arith.constant 0 : i32
    return %arg1, %c0_i32, %c0_i32_0 : i32, i32, i32
  }
  func.func @transform_9(%arg0: i32, %arg1: i32) -> (i32, i32, i32) {
    %c0_i32 = arith.constant 0 : i32
    %c0_i32_0 = arith.constant 0 : i32
    %c0_i32_1 = arith.constant 0 : i32
    return %arg1, %c0_i32, %c0_i32_0 : i32, i32, i32
  }
  func.func @transform_10(%arg0: i32, %arg1: i32) -> (i32, i32, i32) {
    %c0_i32 = arith.constant 0 : i32
    %c0_i32_0 = arith.constant 0 : i32
    %c0_i32_1 = arith.constant 0 : i32
    return %arg1, %c0_i32, %c0_i32_0 : i32, i32, i32
  }
  func.func @transform_11(%arg0: i32, %arg1: i32) -> (i32, i32, i32) {
    %c0_i32 = arith.constant 0 : i32
    %c0_i32_0 = arith.constant 0 : i32
    %c0_i32_1 = arith.constant 0 : i32
    return %arg1, %c0_i32, %c0_i32_0 : i32, i32, i32
  }
  func.func @transform_12(%arg0: i32, %arg1: i32) -> (i32, i32, i32) {
    %c0_i32 = arith.constant 0 : i32
    %c0_i32_0 = arith.constant 0 : i32
    %c0_i32_1 = arith.constant 0 : i32
    return %arg1, %c0_i32, %c0_i32_0 : i32, i32, i32
  }
  func.func @transform_13(%arg0: i32, %arg1: i32) -> (i32, i32, i32) {
    %c0_i32 = arith.constant 0 : i32
    %c0_i32_0 = arith.constant 0 : i32
    %c0_i32_1 = arith.constant 0 : i32
    return %arg1, %c0_i32, %c0_i32_0 : i32, i32, i32
  }
  func.func @transform_14(%arg0: i32, %arg1: i32) -> (i32, i32, i32) {
    %c0_i32 = arith.constant 0 : i32
    %c0_i32_0 = arith.constant 0 : i32
    %c0_i32_1 = arith.constant 0 : i32
    return %arg1, %c0_i32, %c0_i32_0 : i32, i32, i32
  }
  func.func @transform_15(%arg0: i32, %arg1: i32) -> (i32, i32, i32) {
    %c0_i32 = arith.constant 0 : i32
    %c0_i32_0 = arith.constant 0 : i32
    %c0_i32_1 = arith.constant 0 : i32
    return %arg1, %c0_i32, %c0_i32_0 : i32, i32, i32
  }
  func.func @transform_16(%arg0: i32, %arg1: i32) -> (i32, i32, i32) {
    %c0_i32 = arith.constant 0 : i32
    %c0_i32_0 = arith.constant 0 : i32
    %c0_i32_1 = arith.constant 0 : i32
    return %arg1, %c0_i32, %c0_i32_0 : i32, i32, i32
  }
  func.func @transform_17(%arg0: i32, %arg1: i32) -> (i32, i32, i32) {
    %c0_i32 = arith.constant 0 : i32
    %c0_i32_0 = arith.constant 0 : i32
    %c0_i32_1 = arith.constant 0 : i32
    return %arg1, %c0_i32, %c0_i32_0 : i32, i32, i32
  }
  func.func @transform_18(%arg0: i32, %arg1: i32) -> (i32, i32, i32) {
    %c0_i32 = arith.constant 0 : i32
    %c0_i32_0 = arith.constant 0 : i32
    %c0_i32_1 = arith.constant 0 : i32
    return %arg1, %c0_i32, %c0_i32_0 : i32, i32, i32
  }
  func.func @transform_19(%arg0: i32, %arg1: i32) -> (i32, i32, i32) {
    %c0_i32 = arith.constant 0 : i32
    %c0_i32_0 = arith.constant 0 : i32
    %c0_i32_1 = arith.constant 0 : i32
    return %arg1, %c0_i32, %c0_i32_0 : i32, i32, i32
  }
  func.func @transform_20(%arg0: i32, %arg1: i32) -> (i32, i32, i32) {
    %c0_i32 = arith.constant 0 : i32
    %c0_i32_0 = arith.constant 0 : i32
    %c0_i32_1 = arith.constant 0 : i32
    return %arg1, %c0_i32, %c0_i32_0 : i32, i32, i32
  }
  func.func @transform_21(%arg0: i32, %arg1: i32) -> (i32, i32, i32) {
    %c0_i32 = arith.constant 0 : i32
    %c0_i32_0 = arith.constant 0 : i32
    %c0_i32_1 = arith.constant 0 : i32
    return %arg1, %c0_i32, %c0_i32_0 : i32, i32, i32
  }
  func.func @transform_22(%arg0: i32, %arg1: i32) -> (i32, i32, i32) {
    %c0_i32 = arith.constant 0 : i32
    %c0_i32_0 = arith.constant 0 : i32
    %c0_i32_1 = arith.constant 0 : i32
    return %arg1, %c0_i32, %c0_i32_0 : i32, i32, i32
  }
  func.func @transform_23(%arg0: i32, %arg1: i32) -> (i32, i32, i32) {
    %c0_i32 = arith.constant 0 : i32
    %c0_i32_0 = arith.constant 0 : i32
    %c0_i32_1 = arith.constant 0 : i32
    return %arg1, %c0_i32, %c0_i32_0 : i32, i32, i32
  }
  func.func @transform_24(%arg0: i32, %arg1: i32) -> (i32, i32, i32) {
    %c0_i32 = arith.constant 0 : i32
    %c0_i32_0 = arith.constant 0 : i32
    %c0_i32_1 = arith.constant 0 : i32
    return %arg1, %c0_i32, %c0_i32_0 : i32, i32, i32
  }
  func.func @transform_25(%arg0: i32, %arg1: i32) -> (i32, i32, i32) {
    %c0_i32 = arith.constant 0 : i32
    %c0_i32_0 = arith.constant 0 : i32
    %c0_i32_1 = arith.constant 0 : i32
    return %arg0, %c0_i32, %c0_i32_0 : i32, i32, i32
  }
}

</mosaic_0001>

<llo_original>
// kernel: tpu_custom_call.1
$region0: #{tpu_custom_call.1}
  #allocation0 [shape = 'u32[]', space=smem, size = 0x4, offset = 0x4, fixed_abs, tag = 'smem constant byte address 0x4 - core index']
  #allocation1 [shape = 'u32[72,128]{1,0:T(1,128)}', space=vmem, size = 0x9000, scoped, tag = 'internal scratch']
  #allocation2 [shape = 'f32[1,8,32]{2,1,0:T(8,128)}', space=vmem, size = 0x1000, scoped, tag = 'scratch operand']
  %s0 = inlined_call_operand.vmem [shape: f32[2,8,16], index: 0, kind: input, shape index: {}]
  %s1 = inlined_call_operand.hbm [shape: f32[8,32], index: 1, kind: input, shape index: {}]
  %s2 = inlined_call_operand.hbm [shape: f32[8,8], index: 2, kind: input, shape index: {}]
  %s3 = inlined_call_operand.hbm [shape: bf16[16,32], index: 3, kind: input, shape index: {}]
  %s4 = inlined_call_operand.hbm [shape: f32[1,32], index: 4, kind: input, shape index: {}]
  %s5 = inlined_call_operand.vmem [shape: bf16[2,32,32], index: 5, kind: input, shape index: {}]
  %s6 = inlined_call_operand.vmem [shape: f32[2,1,32], index: 6, kind: input, shape index: {}]
  %s7 = inlined_call_operand.vmem [shape: bf16[2,32,16], index: 7, kind: input, shape index: {}]
  %s8 = inlined_call_operand.vmem [shape: f32[2,1,16], index: 8, kind: input, shape index: {}]
  %s9 = inlined_call_operand.vmem [shape: bf16[2,16,32], index: 9, kind: input, shape index: {}]
  %s10 = inlined_call_operand.vmem [shape: f32[2,1,32], index: 10, kind: input, shape index: {}]
  %s11 = inlined_call_operand.vmem [shape: bf16[2,32,16], index: 11, kind: input, shape index: {}]
  %s12 = inlined_call_operand.vmem [shape: f32[2,1,16], index: 12, kind: input, shape index: {}]
  %s13 = inlined_call_operand.vmem [shape: bf16[2,16,32], index: 13, kind: input, shape index: {}]
  %s14 = inlined_call_operand.vmem [shape: f32[2,1,32], index: 14, kind: input, shape index: {}]
  %s15 = inlined_call_operand.vmem [shape: bf16[2,32,32], index: 15, kind: input, shape index: {}]
  %s16 = inlined_call_operand.vmem [shape: f32[2,1,32], index: 16, kind: input, shape index: {}]
  %s17 = inlined_call_operand.vmem [shape: bf16[2,32,64], index: 17, kind: input, shape index: {}]
  %s18 = inlined_call_operand.vmem [shape: f32[2,1,64], index: 18, kind: input, shape index: {}]
  %s19 = inlined_call_operand.vmem [shape: bf16[2,64,32], index: 19, kind: input, shape index: {}]
  %s20 = inlined_call_operand.vmem [shape: f32[2,1,32], index: 20, kind: input, shape index: {}]
  %s21 = inlined_call_operand.vmem [shape: f32[2,1,32], index: 21, kind: input, shape index: {}]
  %s22 = inlined_call_operand.vmem [shape: f32[2,1,32], index: 22, kind: input, shape index: {}]
  %s23 = inlined_call_operand.hbm [shape: f32[2,1,32], index: 23, kind: input, shape index: {}]
  %s24 = inlined_call_operand.vmem [shape: f32[2,1,32], index: 24, kind: input, shape index: {}]
  %s25 = inlined_call_operand.hbm [shape: f32[2,8,32], index: 25, kind: output, shape index: {}]
  %s26 = sld [smem:[#allocation0]]
  $region161: #{tpu_custom_call.1} parent=0
    _
  %s28 = ssub.s32 1, %s26
  %s29 = scalar_select 0, %s28, %s26
  $region1: #{tpu_custom_call.1} parent=0
    #allocation3 [shape = 'u8[4096]{0}', space=vmem, size = 0x1000, scoped, tag = 'input window, operand 1, single buffered']
    #allocation4 [shape = 's32[2]{0}', space=sflag, size = 0x8, scoped, tag = 'scoped memory for tpu_custom_call.1']
    #allocation5 [shape = 's32[2]{0}', space=sflag, size = 0x8, scoped, tag = 'scoped memory for tpu_custom_call.1']
    #allocation6 [shape = 'u8[4096]{0}', space=vmem, size = 0x1000, scoped, tag = 'input window, operand 2, single buffered']
    #allocation7 [shape = 's32[1]{0}', space=sflag, size = 0x4, scoped, tag = 'scoped memory for tpu_custom_call.1']
    #allocation8 [shape = 'u8[4096]{0}', space=vmem, size = 0x1000, scoped, tag = 'input window, operand 3, single buffered']
    #allocation9 [shape = 'u8[512]{0}', space=vmem, size = 0x400, scoped, tag = 'input window, operand 4, single buffered']
    #allocation10 [shape = 's32[1]{0}', space=sflag, size = 0x4, scoped, tag = 'scoped memory for tpu_custom_call.1']
    #allocation11 [shape = 'u8[1024]{0}', space=vmem, size = 0x400, scoped, tag = 'input window, operand 23']
    #allocation12 [shape = 'u8[8192]{0}', space=vmem, size = 0x2000, scoped, tag = 'output window, operand 0']
    %30 = vsyncpa [#allocation4], 0
    %31 = vsyncpa [#allocation7], 0
    %32 = vsyncpa [#allocation10], 0
    %33 = vsyncpa [#allocation5], 0
    %s34 = scalar_lea.sflag [#allocation5], 1
    %35 = vsyncpa %s34, 0
    loop: start=0, step=1, limit=6
    $region2: #{tpu_custom_call.1} parent=1 // loop_pre_header
      _
    $region3: #{tpu_custom_call.1} parent=1 // loop_header
      %s37 = sphi 0, %s41
      %p38 = scmp.ge.s32.totalorder %s37, 6
      %s44 = sphi 0, %s56
      %s45 = sphi 0, %s52
      %s46 = sphi 0, %s44
      %s47 = sphi 0, %s45
      %s48 = sphi 0, %s46
      %s49 = sphi 0, %s47
      %s59 = sphi 0, %s61
      %s62 = sphi 0, %s59
      %s63 = sphi 0, %s62
      %s79 = sphi 0, %s63
      %s83 = sphi 0, %s83
      %s85 = sphi 0, %s83
      %s86 = sphi 0, %s85
      %s100 = sphi 0, %s86
      %s104 = sphi 0, %s104
      %s106 = sphi 0, %s104
      %s107 = sphi 0, %s106
      %s121 = sphi 0, %s107
      %s125 = sphi 0, %s125
      %s127 = sphi 0, %s125
      %s128 = sphi 0, %s127
      %s142 = sphi 0, %s128
      %s146 = sphi 0, %s146
      %s148 = sphi 0, %s146
      %s149 = sphi 0, %s148
      %s163 = sphi 0, %s149
      %s169 = sphi 0, %s171
      %s172 = sphi 0, %s169
      %s173 = sphi 0, %s172
      %s189 = sphi 0, %s173
      %s195 = sphi 0, %s197
      %s198 = sphi 0, %s195
      %s199 = sphi 0, %s198
      %s215 = sphi 0, %s199
      %s221 = sphi 0, %s223
      %s224 = sphi 0, %s221
      %s225 = sphi 0, %s224
      %s241 = sphi 0, %s225
      %s247 = sphi 0, %s249
      %s250 = sphi 0, %s247
      %s251 = sphi 0, %s250
      %s267 = sphi 0, %s251
      %s273 = sphi 0, %s275
      %s276 = sphi 0, %s273
      %s277 = sphi 0, %s276
      %s293 = sphi 0, %s277
      %s299 = sphi 0, %s301
      %s302 = sphi 0, %s299
      %s303 = sphi 0, %s302
      %s319 = sphi 0, %s303
      %s325 = sphi 0, %s327
      %s328 = sphi 0, %s325
      %s329 = sphi 0, %s328
      %s345 = sphi 0, %s329
      %s351 = sphi 0, %s353
      %s354 = sphi 0, %s351
      %s355 = sphi 0, %s354
      %s371 = sphi 0, %s355
      %s377 = sphi 0, %s379
      %s380 = sphi 0, %s377
      %s381 = sphi 0, %s380
      %s397 = sphi 0, %s381
      %s403 = sphi 0, %s405
      %s406 = sphi 0, %s403
      %s407 = sphi 0, %s406
      %s423 = sphi 0, %s407
      %s429 = sphi 0, %s431
      %s432 = sphi 0, %s429
      %s433 = sphi 0, %s432
      %s449 = sphi 0, %s433
      %s455 = sphi 0, %s457
      %s458 = sphi 0, %s455
      %s459 = sphi 0, %s458
      %s475 = sphi 0, %s459
      %s481 = sphi 0, %s483
      %s484 = sphi 0, %s481
      %s485 = sphi 0, %s484
      %s501 = sphi 0, %s485
      %s507 = sphi 0, %s509
      %s510 = sphi 0, %s507
      %s511 = sphi 0, %s510
      %s527 = sphi 0, %s511
      %s533 = sphi 0, %s535
      %s536 = sphi 0, %s533
      %s537 = sphi 0, %s536
      %s553 = sphi 0, %s537
      %s559 = sphi 0, %s561
      %s562 = sphi 0, %s559
      %s563 = sphi 0, %s562
      %s579 = sphi 0, %s563
      %s585 = sphi 0, %s587
      %s588 = sphi 0, %s585
      %s589 = sphi 0, %s588
      %s605 = sphi 0, %s589
      %s611 = sphi 0, %s613
      %s614 = sphi 0, %s611
      %s615 = sphi 0, %s614
      %s631 = sphi 0, %s615
      %s637 = sphi 0, %s639
      %s640 = sphi 0, %s637
      %s641 = sphi 0, %s640
      %s657 = sphi 0, %s641
      %s663 = sphi 0, %s665
      %s666 = sphi 0, %s663
      %s667 = sphi 0, %s666
      %s683 = sphi 0, %s667
      %s689 = sphi 0, %s691
      %s692 = sphi 0, %s689
      %s693 = sphi 0, %s692
      %s709 = sphi 0, %s693
    $region4: #{tpu_custom_call.1} parent=1 // loop_header_branch
      %40 = sbr.rel (%p38) target = $region8
    $region5: #{tpu_custom_call.1} parent=1 // loop_body
      %s42 = ssub.s32 %s37, 1
      %s43 = ssub.s32 %s37, 2
      %s50 = sadd.s32 1, %s45
      %p51 = scmp.ge.s32.totalorder %s50, 2
      %s52 = scalar_select %p51, 0, %s50
      %s53 = sadd.s32 1, %s44
      %s54 = scalar_select %p51, %s53, %s44
      %p55 = scmp.ge.s32.totalorder %s54, 2
      %s56 = scalar_select %p55, 0, %s54
      %s57 = ssub.s32 %s44, %s56
      %p58 = scmp.eq.s32.totalorder %s57, 0
      %s60 = sadd.s32 %s59, 1
      %s61 = scalar_select %p58, %s59, %s60
      %p64 = pneg %p58
      %p65 = scmp.eq.s32.totalorder %s37, 3
      %p66 = por %p64, %p65
      %p67 = scmp.ne.s32.totalorder %s59, %s62
      %p68 = scmp.eq.s32.totalorder %s37, 0
      %p69 = por %p67, %p68
      %p70 = scmp.ne.s32.totalorder %s59, %s62
      %p71 = scmp.eq.s32.totalorder %s42, 3
      %p72 = por %p70, %p71
      %p73 = scmp.ne.s32.totalorder %s62, %s63
      %p74 = scmp.eq.s32.totalorder %s42, 0
      %p75 = por %p73, %p74
      %p76 = scmp.ne.s32.totalorder %s62, %s63
      %p77 = scmp.eq.s32.totalorder %s43, 3
      %p78 = por %p76, %p77
      %p80 = scmp.ne.s32.totalorder %s63, %s79
      %p81 = scmp.eq.s32.totalorder %s43, 0
      %p82 = por %p80, %p81
      %s84 = sadd.s32 %s83, 1
      %p87 = scmp.eq.s32.totalorder %s37, 3
      %p88 = scmp.ne.s32.totalorder %s83, %s85
      %p89 = scmp.eq.s32.totalorder %s37, 0
      %p90 = por %p88, %p89
      %p91 = scmp.ne.s32.totalorder %s83, %s85
      %p92 = scmp.eq.s32.totalorder %s42, 3
      %p93 = por %p91, %p92
      %p94 = scmp.ne.s32.totalorder %s85, %s86
      %p95 = scmp.eq.s32.totalorder %s42, 0
      %p96 = por %p94, %p95
      %p97 = scmp.ne.s32.totalorder %s85, %s86
      %p98 = scmp.eq.s32.totalorder %s43, 3
      %p99 = por %p97, %p98
      %p101 = scmp.ne.s32.totalorder %s86, %s100
      %p102 = scmp.eq.s32.totalorder %s43, 0
      %p103 = por %p101, %p102
      %s105 = sadd.s32 %s104, 1
      %p108 = scmp.eq.s32.totalorder %s37, 3
      %p109 = scmp.ne.s32.totalorder %s104, %s106
      %p110 = scmp.eq.s32.totalorder %s37, 0
      %p111 = por %p109, %p110
      %p112 = scmp.ne.s32.totalorder %s104, %s106
      %p113 = scmp.eq.s32.totalorder %s42, 3
      %p114 = por %p112, %p113
      %p115 = scmp.ne.s32.totalorder %s106, %s107
      %p116 = scmp.eq.s32.totalorder %s42, 0
      %p117 = por %p115, %p116
      %p118 = scmp.ne.s32.totalorder %s106, %s107
      %p119 = scmp.eq.s32.totalorder %s43, 3
      %p120 = por %p118, %p119
      %p122 = scmp.ne.s32.totalorder %s107, %s121
      %p123 = scmp.eq.s32.totalorder %s43, 0
      %p124 = por %p122, %p123
      %s126 = sadd.s32 %s125, 1
      %p129 = scmp.eq.s32.totalorder %s37, 3
      %p130 = scmp.ne.s32.totalorder %s125, %s127
      %p131 = scmp.eq.s32.totalorder %s37, 0
      %p132 = por %p130, %p131
      %p133 = scmp.ne.s32.totalorder %s125, %s127
      %p134 = scmp.eq.s32.totalorder %s42, 3
      %p135 = por %p133, %p134
      %p136 = scmp.ne.s32.totalorder %s127, %s128
      %p137 = scmp.eq.s32.totalorder %s42, 0
      %p138 = por %p136, %p137
      %p139 = scmp.ne.s32.totalorder %s127, %s128
      %p140 = scmp.eq.s32.totalorder %s43, 3
      %p141 = por %p139, %p140
      %p143 = scmp.ne.s32.totalorder %s128, %s142
      %p144 = scmp.eq.s32.totalorder %s43, 0
      %p145 = por %p143, %p144
      %s147 = sadd.s32 %s146, 1
      %p150 = scmp.eq.s32.totalorder %s37, 3
      %p151 = scmp.ne.s32.totalorder %s146, %s148
      %p152 = scmp.eq.s32.totalorder %s37, 0
      %p153 = por %p151, %p152
      %p154 = scmp.ne.s32.totalorder %s146, %s148
      %p155 = scmp.eq.s32.totalorder %s42, 3
      %p156 = por %p154, %p155
      %p157 = scmp.ne.s32.totalorder %s148, %s149
      %p158 = scmp.eq.s32.totalorder %s42, 0
      %p159 = por %p157, %p158
      %p160 = scmp.ne.s32.totalorder %s148, %s149
      %p161 = scmp.eq.s32.totalorder %s43, 3
      %p162 = por %p160, %p161
      %p164 = scmp.ne.s32.totalorder %s149, %s163
      %p165 = scmp.eq.s32.totalorder %s43, 0
      %p166 = por %p164, %p165
      %s167 = ssub.s32 %s45, %s52
      %p168 = scmp.eq.s32.totalorder %s167, 0
      %s170 = sadd.s32 %s169, 1
      %s171 = scalar_select %p168, %s169, %s170
      %p174 = pneg %p168
      %p175 = scmp.eq.s32.totalorder %s37, 3
      %p176 = por %p174, %p175
      %p177 = scmp.ne.s32.totalorder %s169, %s172
      %p178 = scmp.eq.s32.totalorder %s37, 0
      %p179 = por %p177, %p178
      %p180 = scmp.ne.s32.totalorder %s169, %s172
      %p181 = scmp.eq.s32.totalorder %s42, 3
      %p182 = por %p180, %p181
      %p183 = scmp.ne.s32.totalorder %s172, %s173
      %p184 = scmp.eq.s32.totalorder %s42, 0
      %p185 = por %p183, %p184
      %p186 = scmp.ne.s32.totalorder %s172, %s173
      %p187 = scmp.eq.s32.totalorder %s43, 3
      %p188 = por %p186, %p187
      %p190 = scmp.ne.s32.totalorder %s173, %s189
      %p191 = scmp.eq.s32.totalorder %s43, 0
      %p192 = por %p190, %p191
      %s193 = ssub.s32 %s45, %s52
      %p194 = scmp.eq.s32.totalorder %s193, 0
      %s196 = sadd.s32 %s195, 1
      %s197 = scalar_select %p194, %s195, %s196
      %p200 = pneg %p194
      %p201 = scmp.eq.s32.totalorder %s37, 3
      %p202 = por %p200, %p201
      %p203 = scmp.ne.s32.totalorder %s195, %s198
      %p204 = scmp.eq.s32.totalorder %s37, 0
      %p205 = por %p203, %p204
      %p206 = scmp.ne.s32.totalorder %s195, %s198
      %p207 = scmp.eq.s32.totalorder %s42, 3
      %p208 = por %p206, %p207
      %p209 = scmp.ne.s32.totalorder %s198, %s199
      %p210 = scmp.eq.s32.totalorder %s42, 0
      %p211 = por %p209, %p210
      %p212 = scmp.ne.s32.totalorder %s198, %s199
      %p213 = scmp.eq.s32.totalorder %s43, 3
      %p214 = por %p212, %p213
      %p216 = scmp.ne.s32.totalorder %s199, %s215
      %p217 = scmp.eq.s32.totalorder %s43, 0
      %p218 = por %p216, %p217
      %s219 = ssub.s32 %s45, %s52
      %p220 = scmp.eq.s32.totalorder %s219, 0
      %s222 = sadd.s32 %s221, 1
      %s223 = scalar_select %p220, %s221, %s222
      %p226 = pneg %p220
      %p227 = scmp.eq.s32.totalorder %s37, 3
      %p228 = por %p226, %p227
      %p229 = scmp.ne.s32.totalorder %s221, %s224
      %p230 = scmp.eq.s32.totalorder %s37, 0
      %p231 = por %p229, %p230
      %p232 = scmp.ne.s32.totalorder %s221, %s224
      %p233 = scmp.eq.s32.totalorder %s42, 3
      %p234 = por %p232, %p233
      %p235 = scmp.ne.s32.totalorder %s224, %s225
      %p236 = scmp.eq.s32.totalorder %s42, 0
      %p237 = por %p235, %p236
      %p238 = scmp.ne.s32.totalorder %s224, %s225
      %p239 = scmp.eq.s32.totalorder %s43, 3
      %p240 = por %p238, %p239
      %p242 = scmp.ne.s32.totalorder %s225, %s241
      %p243 = scmp.eq.s32.totalorder %s43, 0
      %p244 = por %p242, %p243
      %s245 = ssub.s32 %s45, %s52
      %p246 = scmp.eq.s32.totalorder %s245, 0
      %s248 = sadd.s32 %s247, 1
      %s249 = scalar_select %p246, %s247, %s248
      %p252 = pneg %p246
      %p253 = scmp.eq.s32.totalorder %s37, 3
      %p254 = por %p252, %p253
      %p255 = scmp.ne.s32.totalorder %s247, %s250
      %p256 = scmp.eq.s32.totalorder %s37, 0
      %p257 = por %p255, %p256
      %p258 = scmp.ne.s32.totalorder %s247, %s250
      %p259 = scmp.eq.s32.totalorder %s42, 3
      %p260 = por %p258, %p259
      %p261 = scmp.ne.s32.totalorder %s250, %s251
      %p262 = scmp.eq.s32.totalorder %s42, 0
      %p263 = por %p261, %p262
      %p264 = scmp.ne.s32.totalorder %s250, %s251
      %p265 = scmp.eq.s32.totalorder %s43, 3
      %p266 = por %p264, %p265
      %p268 = scmp.ne.s32.totalorder %s251, %s267
      %p269 = scmp.eq.s32.totalorder %s43, 0
      %p270 = por %p268, %p269
      %s271 = ssub.s32 %s45, %s52
      %p272 = scmp.eq.s32.totalorder %s271, 0
      %s274 = sadd.s32 %s273, 1
      %s275 = scalar_select %p272, %s273, %s274
      %p278 = pneg %p272
      %p279 = scmp.eq.s32.totalorder %s37, 3
      %p280 = por %p278, %p279
      %p281 = scmp.ne.s32.totalorder %s273, %s276
      %p282 = scmp.eq.s32.totalorder %s37, 0
      %p283 = por %p281, %p282
      %p284 = scmp.ne.s32.totalorder %s273, %s276
      %p285 = scmp.eq.s32.totalorder %s42, 3
      %p286 = por %p284, %p285
      %p287 = scmp.ne.s32.totalorder %s276, %s277
      %p288 = scmp.eq.s32.totalorder %s42, 0
      %p289 = por %p287, %p288
      %p290 = scmp.ne.s32.totalorder %s276, %s277
      %p291 = scmp.eq.s32.totalorder %s43, 3
      %p292 = por %p290, %p291
      %p294 = scmp.ne.s32.totalorder %s277, %s293
      %p295 = scmp.eq.s32.totalorder %s43, 0
      %p296 = por %p294, %p295
      %s297 = ssub.s32 %s45, %s52
      %p298 = scmp.eq.s32.totalorder %s297, 0
      %s300 = sadd.s32 %s299, 1
      %s301 = scalar_select %p298, %s299, %s300
      %p304 = pneg %p298
      %p305 = scmp.eq.s32.totalorder %s37, 3
      %p306 = por %p304, %p305
      %p307 = scmp.ne.s32.totalorder %s299, %s302
      %p308 = scmp.eq.s32.totalorder %s37, 0
      %p309 = por %p307, %p308
      %p310 = scmp.ne.s32.totalorder %s299, %s302
      %p311 = scmp.eq.s32.totalorder %s42, 3
      %p312 = por %p310, %p311
      %p313 = scmp.ne.s32.totalorder %s302, %s303
      %p314 = scmp.eq.s32.totalorder %s42, 0
      %p315 = por %p313, %p314
      %p316 = scmp.ne.s32.totalorder %s302, %s303
      %p317 = scmp.eq.s32.totalorder %s43, 3
      %p318 = por %p316, %p317
      %p320 = scmp.ne.s32.totalorder %s303, %s319
      %p321 = scmp.eq.s32.totalorder %s43, 0
      %p322 = por %p320, %p321
      %s323 = ssub.s32 %s45, %s52
      %p324 = scmp.eq.s32.totalorder %s323, 0
      %s326 = sadd.s32 %s325, 1
      %s327 = scalar_select %p324, %s325, %s326
      %p330 = pneg %p324
      %p331 = scmp.eq.s32.totalorder %s37, 3
      %p332 = por %p330, %p331
      %p333 = scmp.ne.s32.totalorder %s325, %s328
      %p334 = scmp.eq.s32.totalorder %s37, 0
      %p335 = por %p333, %p334
      %p336 = scmp.ne.s32.totalorder %s325, %s328
      %p337 = scmp.eq.s32.totalorder %s42, 3
      %p338 = por %p336, %p337
      %p339 = scmp.ne.s32.totalorder %s328, %s329
      %p340 = scmp.eq.s32.totalorder %s42, 0
      %p341 = por %p339, %p340
      %p342 = scmp.ne.s32.totalorder %s328, %s329
      %p343 = scmp.eq.s32.totalorder %s43, 3
      %p344 = por %p342, %p343
      %p346 = scmp.ne.s32.totalorder %s329, %s345
      %p347 = scmp.eq.s32.totalorder %s43, 0
      %p348 = por %p346, %p347
      %s349 = ssub.s32 %s45, %s52
      %p350 = scmp.eq.s32.totalorder %s349, 0
      %s352 = sadd.s32 %s351, 1
      %s353 = scalar_select %p350, %s351, %s352
      %p356 = pneg %p350
      %p357 = scmp.eq.s32.totalorder %s37, 3
      %p358 = por %p356, %p357
      %p359 = scmp.ne.s32.totalorder %s351, %s354
      %p360 = scmp.eq.s32.totalorder %s37, 0
      %p361 = por %p359, %p360
      %p362 = scmp.ne.s32.totalorder %s351, %s354
      %p363 = scmp.eq.s32.totalorder %s42, 3
      %p364 = por %p362, %p363
      %p365 = scmp.ne.s32.totalorder %s354, %s355
      %p366 = scmp.eq.s32.totalorder %s42, 0
      %p367 = por %p365, %p366
      %p368 = scmp.ne.s32.totalorder %s354, %s355
      %p369 = scmp.eq.s32.totalorder %s43, 3
      %p370 = por %p368, %p369
      %p372 = scmp.ne.s32.totalorder %s355, %s371
      %p373 = scmp.eq.s32.totalorder %s43, 0
      %p374 = por %p372, %p373
      %s375 = ssub.s32 %s45, %s52
      %p376 = scmp.eq.s32.totalorder %s375, 0
      %s378 = sadd.s32 %s377, 1
      %s379 = scalar_select %p376, %s377, %s378
      %p382 = pneg %p376
      %p383 = scmp.eq.s32.totalorder %s37, 3
      %p384 = por %p382, %p383
      %p385 = scmp.ne.s32.totalorder %s377, %s380
      %p386 = scmp.eq.s32.totalorder %s37, 0
      %p387 = por %p385, %p386
      %p388 = scmp.ne.s32.totalorder %s377, %s380
      %p389 = scmp.eq.s32.totalorder %s42, 3
      %p390 = por %p388, %p389
      %p391 = scmp.ne.s32.totalorder %s380, %s381
      %p392 = scmp.eq.s32.totalorder %s42, 0
      %p393 = por %p391, %p392
      %p394 = scmp.ne.s32.totalorder %s380, %s381
      %p395 = scmp.eq.s32.totalorder %s43, 3
      %p396 = por %p394, %p395
      %p398 = scmp.ne.s32.totalorder %s381, %s397
      %p399 = scmp.eq.s32.totalorder %s43, 0
      %p400 = por %p398, %p399
      %s401 = ssub.s32 %s45, %s52
      %p402 = scmp.eq.s32.totalorder %s401, 0
      %s404 = sadd.s32 %s403, 1
      %s405 = scalar_select %p402, %s403, %s404
      %p408 = pneg %p402
      %p409 = scmp.eq.s32.totalorder %s37, 3
      %p410 = por %p408, %p409
      %p411 = scmp.ne.s32.totalorder %s403, %s406
      %p412 = scmp.eq.s32.totalorder %s37, 0
      %p413 = por %p411, %p412
      %p414 = scmp.ne.s32.totalorder %s403, %s406
      %p415 = scmp.eq.s32.totalorder %s42, 3
      %p416 = por %p414, %p415
      %p417 = scmp.ne.s32.totalorder %s406, %s407
      %p418 = scmp.eq.s32.totalorder %s42, 0
      %p419 = por %p417, %p418
      %p420 = scmp.ne.s32.totalorder %s406, %s407
      %p421 = scmp.eq.s32.totalorder %s43, 3
      %p422 = por %p420, %p421
      %p424 = scmp.ne.s32.totalorder %s407, %s423
      %p425 = scmp.eq.s32.totalorder %s43, 0
      %p426 = por %p424, %p425
      %s427 = ssub.s32 %s45, %s52
      %p428 = scmp.eq.s32.totalorder %s427, 0
      %s430 = sadd.s32 %s429, 1
      %s431 = scalar_select %p428, %s429, %s430
      %p434 = pneg %p428
      %p435 = scmp.eq.s32.totalorder %s37, 3
      %p436 = por %p434, %p435
      %p437 = scmp.ne.s32.totalorder %s429, %s432
      %p438 = scmp.eq.s32.totalorder %s37, 0
      %p439 = por %p437, %p438
      %p440 = scmp.ne.s32.totalorder %s429, %s432
      %p441 = scmp.eq.s32.totalorder %s42, 3
      %p442 = por %p440, %p441
      %p443 = scmp.ne.s32.totalorder %s432, %s433
      %p444 = scmp.eq.s32.totalorder %s42, 0
      %p445 = por %p443, %p444
      %p446 = scmp.ne.s32.totalorder %s432, %s433
      %p447 = scmp.eq.s32.totalorder %s43, 3
      %p448 = por %p446, %p447
      %p450 = scmp.ne.s32.totalorder %s433, %s449
      %p451 = scmp.eq.s32.totalorder %s43, 0
      %p452 = por %p450, %p451
      %s453 = ssub.s32 %s45, %s52
      %p454 = scmp.eq.s32.totalorder %s453, 0
      %s456 = sadd.s32 %s455, 1
      %s457 = scalar_select %p454, %s455, %s456
      %p460 = pneg %p454
      %p461 = scmp.eq.s32.totalorder %s37, 3
      %p462 = por %p460, %p461
      %p463 = scmp.ne.s32.totalorder %s455, %s458
      %p464 = scmp.eq.s32.totalorder %s37, 0
      %p465 = por %p463, %p464
      %p466 = scmp.ne.s32.totalorder %s455, %s458
      %p467 = scmp.eq.s32.totalorder %s42, 3
      %p468 = por %p466, %p467
      %p469 = scmp.ne.s32.totalorder %s458, %s459
      %p470 = scmp.eq.s32.totalorder %s42, 0
      %p471 = por %p469, %p470
      %p472 = scmp.ne.s32.totalorder %s458, %s459
      %p473 = scmp.eq.s32.totalorder %s43, 3
      %p474 = por %p472, %p473
      %p476 = scmp.ne.s32.totalorder %s459, %s475
      %p477 = scmp.eq.s32.totalorder %s43, 0
      %p478 = por %p476, %p477
      %s479 = ssub.s32 %s45, %s52
      %p480 = scmp.eq.s32.totalorder %s479, 0
      %s482 = sadd.s32 %s481, 1
      %s483 = scalar_select %p480, %s481, %s482
      %p486 = pneg %p480
      %p487 = scmp.eq.s32.totalorder %s37, 3
      %p488 = por %p486, %p487
      %p489 = scmp.ne.s32.totalorder %s481, %s484
      %p490 = scmp.eq.s32.totalorder %s37, 0
      %p491 = por %p489, %p490
      %p492 = scmp.ne.s32.totalorder %s481, %s484
      %p493 = scmp.eq.s32.totalorder %s42, 3
      %p494 = por %p492, %p493
      %p495 = scmp.ne.s32.totalorder %s484, %s485
      %p496 = scmp.eq.s32.totalorder %s42, 0
      %p497 = por %p495, %p496
      %p498 = scmp.ne.s32.totalorder %s484, %s485
      %p499 = scmp.eq.s32.totalorder %s43, 3
      %p500 = por %p498, %p499
      %p502 = scmp.ne.s32.totalorder %s485, %s501
      %p503 = scmp.eq.s32.totalorder %s43, 0
      %p504 = por %p502, %p503
      %s505 = ssub.s32 %s45, %s52
      %p506 = scmp.eq.s32.totalorder %s505, 0
      %s508 = sadd.s32 %s507, 1
      %s509 = scalar_select %p506, %s507, %s508
      %p512 = pneg %p506
      %p513 = scmp.eq.s32.totalorder %s37, 3
      %p514 = por %p512, %p513
      %p515 = scmp.ne.s32.totalorder %s507, %s510
      %p516 = scmp.eq.s32.totalorder %s37, 0
      %p517 = por %p515, %p516
      %p518 = scmp.ne.s32.totalorder %s507, %s510
      %p519 = scmp.eq.s32.totalorder %s42, 3
      %p520 = por %p518, %p519
      %p521 = scmp.ne.s32.totalorder %s510, %s511
      %p522 = scmp.eq.s32.totalorder %s42, 0
      %p523 = por %p521, %p522
      %p524 = scmp.ne.s32.totalorder %s510, %s511
      %p525 = scmp.eq.s32.totalorder %s43, 3
      %p526 = por %p524, %p525
      %p528 = scmp.ne.s32.totalorder %s511, %s527
      %p529 = scmp.eq.s32.totalorder %s43, 0
      %p530 = por %p528, %p529
      %s531 = ssub.s32 %s45, %s52
      %p532 = scmp.eq.s32.totalorder %s531, 0
      %s534 = sadd.s32 %s533, 1
      %s535 = scalar_select %p532, %s533, %s534
      %p538 = pneg %p532
      %p539 = scmp.eq.s32.totalorder %s37, 3
      %p540 = por %p538, %p539
      %p541 = scmp.ne.s32.totalorder %s533, %s536
      %p542 = scmp.eq.s32.totalorder %s37, 0
      %p543 = por %p541, %p542
      %p544 = scmp.ne.s32.totalorder %s533, %s536
      %p545 = scmp.eq.s32.totalorder %s42, 3
      %p546 = por %p544, %p545
      %p547 = scmp.ne.s32.totalorder %s536, %s537
      %p548 = scmp.eq.s32.totalorder %s42, 0
      %p549 = por %p547, %p548
      %p550 = scmp.ne.s32.totalorder %s536, %s537
      %p551 = scmp.eq.s32.totalorder %s43, 3
      %p552 = por %p550, %p551
      %p554 = scmp.ne.s32.totalorder %s537, %s553
      %p555 = scmp.eq.s32.totalorder %s43, 0
      %p556 = por %p554, %p555
      %s557 = ssub.s32 %s45, %s52
      %p558 = scmp.eq.s32.totalorder %s557, 0
      %s560 = sadd.s32 %s559, 1
      %s561 = scalar_select %p558, %s559, %s560
      %p564 = pneg %p558
      %p565 = scmp.eq.s32.totalorder %s37, 3
      %p566 = por %p564, %p565
      %p567 = scmp.ne.s32.totalorder %s559, %s562
      %p568 = scmp.eq.s32.totalorder %s37, 0
      %p569 = por %p567, %p568
      %p570 = scmp.ne.s32.totalorder %s559, %s562
      %p571 = scmp.eq.s32.totalorder %s42, 3
      %p572 = por %p570, %p571
      %p573 = scmp.ne.s32.totalorder %s562, %s563
      %p574 = scmp.eq.s32.totalorder %s42, 0
      %p575 = por %p573, %p574
      %p576 = scmp.ne.s32.totalorder %s562, %s563
      %p577 = scmp.eq.s32.totalorder %s43, 3
      %p578 = por %p576, %p577
      %p580 = scmp.ne.s32.totalorder %s563, %s579
      %p581 = scmp.eq.s32.totalorder %s43, 0
      %p582 = por %p580, %p581
      %s583 = ssub.s32 %s45, %s52
      %p584 = scmp.eq.s32.totalorder %s583, 0
      %s586 = sadd.s32 %s585, 1
      %s587 = scalar_select %p584, %s585, %s586
      %p590 = pneg %p584
      %p591 = scmp.eq.s32.totalorder %s37, 3
      %p592 = por %p590, %p591
      %p593 = scmp.ne.s32.totalorder %s585, %s588
      %p594 = scmp.eq.s32.totalorder %s37, 0
      %p595 = por %p593, %p594
      %p596 = scmp.ne.s32.totalorder %s585, %s588
      %p597 = scmp.eq.s32.totalorder %s42, 3
      %p598 = por %p596, %p597
      %p599 = scmp.ne.s32.totalorder %s588, %s589
      %p600 = scmp.eq.s32.totalorder %s42, 0
      %p601 = por %p599, %p600
      %p602 = scmp.ne.s32.totalorder %s588, %s589
      %p603 = scmp.eq.s32.totalorder %s43, 3
      %p604 = por %p602, %p603
      %p606 = scmp.ne.s32.totalorder %s589, %s605
      %p607 = scmp.eq.s32.totalorder %s43, 0
      %p608 = por %p606, %p607
      %s609 = ssub.s32 %s45, %s52
      %p610 = scmp.eq.s32.totalorder %s609, 0
      %s612 = sadd.s32 %s611, 1
      %s613 = scalar_select %p610, %s611, %s612
      %p616 = pneg %p610
      %p617 = scmp.eq.s32.totalorder %s37, 3
      %p618 = por %p616, %p617
      %p619 = scmp.ne.s32.totalorder %s611, %s614
      %p620 = scmp.eq.s32.totalorder %s37, 0
      %p621 = por %p619, %p620
      %p622 = scmp.ne.s32.totalorder %s611, %s614
      %p623 = scmp.eq.s32.totalorder %s42, 3
      %p624 = por %p622, %p623
      %p625 = scmp.ne.s32.totalorder %s614, %s615
      %p626 = scmp.eq.s32.totalorder %s42, 0
      %p627 = por %p625, %p626
      %p628 = scmp.ne.s32.totalorder %s614, %s615
      %p629 = scmp.eq.s32.totalorder %s43, 3
      %p630 = por %p628, %p629
      %p632 = scmp.ne.s32.totalorder %s615, %s631
      %p633 = scmp.eq.s32.totalorder %s43, 0
      %p634 = por %p632, %p633
      %s635 = ssub.s32 %s45, %s52
      %p636 = scmp.eq.s32.totalorder %s635, 0
      %s638 = sadd.s32 %s637, 1
      %s639 = scalar_select %p636, %s637, %s638
      %p642 = pneg %p636
      %p643 = scmp.eq.s32.totalorder %s37, 3
      %p644 = por %p642, %p643
      %p645 = scmp.ne.s32.totalorder %s637, %s640
      %p646 = scmp.eq.s32.totalorder %s37, 0
      %p647 = por %p645, %p646
      %p648 = scmp.ne.s32.totalorder %s637, %s640
      %p649 = scmp.eq.s32.totalorder %s42, 3
      %p650 = por %p648, %p649
      %p651 = scmp.ne.s32.totalorder %s640, %s641
      %p652 = scmp.eq.s32.totalorder %s42, 0
      %p653 = por %p651, %p652
      %p654 = scmp.ne.s32.totalorder %s640, %s641
      %p655 = scmp.eq.s32.totalorder %s43, 3
      %p656 = por %p654, %p655
      %p658 = scmp.ne.s32.totalorder %s641, %s657
      %p659 = scmp.eq.s32.totalorder %s43, 0
      %p660 = por %p658, %p659
      %s661 = ssub.s32 %s45, %s52
      %p662 = scmp.eq.s32.totalorder %s661, 0
      %s664 = sadd.s32 %s663, 1
      %s665 = scalar_select %p662, %s663, %s664
      %p668 = pneg %p662
      %p669 = scmp.eq.s32.totalorder %s37, 3
      %p670 = por %p668, %p669
      %p671 = scmp.ne.s32.totalorder %s663, %s666
      %p672 = scmp.eq.s32.totalorder %s37, 0
      %p673 = por %p671, %p672
      %p674 = scmp.ne.s32.totalorder %s663, %s666
      %p675 = scmp.eq.s32.totalorder %s42, 3
      %p676 = por %p674, %p675
      %p677 = scmp.ne.s32.totalorder %s666, %s667
      %p678 = scmp.eq.s32.totalorder %s42, 0
      %p679 = por %p677, %p678
      %p680 = scmp.ne.s32.totalorder %s666, %s667
      %p681 = scmp.eq.s32.totalorder %s43, 3
      %p682 = por %p680, %p681
      %p684 = scmp.ne.s32.totalorder %s667, %s683
      %p685 = scmp.eq.s32.totalorder %s43, 0
      %p686 = por %p684, %p685
      %s687 = ssub.s32 %s44, %s56
      %p688 = scmp.eq.s32.totalorder %s687, 0
      %s690 = sadd.s32 %s689, 1
      %s691 = scalar_select %p688, %s689, %s690
      %p694 = pneg %p688
      %p695 = scmp.eq.s32.totalorder %s37, 3
      %p696 = por %p694, %p695
      %p697 = scmp.ne.s32.totalorder %s689, %s692
      %p698 = scmp.eq.s32.totalorder %s37, 0
      %p699 = por %p697, %p698
      %p700 = scmp.ne.s32.totalorder %s689, %s692
      %p701 = scmp.eq.s32.totalorder %s42, 3
      %p702 = por %p700, %p701
      %p703 = scmp.ne.s32.totalorder %s692, %s693
      %p704 = scmp.eq.s32.totalorder %s42, 0
      %p705 = por %p703, %p704
      %p706 = scmp.ne.s32.totalorder %s692, %s693
      %p707 = scmp.eq.s32.totalorder %s43, 3
      %p708 = por %p706, %p707
      %p710 = scmp.ne.s32.totalorder %s693, %s709
      %p711 = scmp.eq.s32.totalorder %s43, 0
      %p712 = por %p710, %p711
      %p713 = scmp.le.s32.totalorder 1, %s37
      %p714 = scmp.lt.s32.totalorder %s37, 5
      %p715 = pnand %p713, %p714
      %p716 = pneg %p715
      // Predicated region
      $region9: #{tpu_custom_call.1} parent=5 // pred_check
        _
      $region10: #{tpu_custom_call.1} parent=5 // pred_check_branch
        %718 = sbr.rel (%p715) target = $region12
      $region11: #{tpu_custom_call.1} parent=5 // pred_region
        %s719 = ssub.s32 %s37, 1
        // Predicated region
        $region13: #{tpu_custom_call.1} parent=11 // pred_check
          %p720 = pneg %p96
        $region14: #{tpu_custom_call.1} parent=11 // pred_check_branch
          %722 = sbr.rel (%p720) target = $region16
        $region15: #{tpu_custom_call.1} parent=11 // pred_region
          %724 = vsyncadd [#allocation4], 0
          %s726 = sshll.u32 %s1, 4
          %s727 = int_to_ptr.hbm [resolvable:$true] %s726
          %s728 = sshll.u32 [#allocation3], 4
          %s729 = int_to_ptr.vmem [resolvable:$true] %s728
          %731 = dma.hbm_to_vmem [thread:$0]  %s727, 128, %s729, [#allocation4]
        $region16: #{tpu_custom_call.1} parent=11 // pred_fallthru
          _
        // Predicated region
        $region17: #{tpu_custom_call.1} parent=11 // pred_check
          %p732 = pneg %p117
        $region18: #{tpu_custom_call.1} parent=11 // pred_check_branch
          %734 = sbr.rel (%p732) target = $region20
        $region19: #{tpu_custom_call.1} parent=11 // pred_region
          %736 = vsyncadd [#allocation7], 0
          %s738 = sshll.u32 %s2, 4
          %s739 = int_to_ptr.hbm [resolvable:$true] %s738
          %s740 = sshll.u32 [#allocation6], 4
          %s741 = int_to_ptr.vmem [resolvable:$true] %s740
          %743 = dma.hbm_to_vmem [thread:$0]  %s739, 128, %s741, [#allocation7]
        $region20: #{tpu_custom_call.1} parent=11 // pred_fallthru
          _
        // Predicated region
        $region21: #{tpu_custom_call.1} parent=11 // pred_check
          %p744 = pneg %p138
        $region22: #{tpu_custom_call.1} parent=11 // pred_check_branch
          %746 = sbr.rel (%p744) target = $region24
        $region23: #{tpu_custom_call.1} parent=11 // pred_region
          %748 = vsyncadd [#allocation7], 0
          %s749 = sshll.u32 %s3, 4
          %s750 = int_to_ptr.hbm [resolvable:$true] %s749
          %s751 = sshll.u32 [#allocation8], 4
          %s752 = int_to_ptr.vmem [resolvable:$true] %s751
          %757 = dma.hbm_to_vmem [thread:$0]  %s750, 128, %s752, [#allocation7], 64, 64, 4
        $region24: #{tpu_custom_call.1} parent=11 // pred_fallthru
          _
        // Predicated region
        $region25: #{tpu_custom_call.1} parent=11 // pred_check
          %p758 = pneg %p159
        $region26: #{tpu_custom_call.1} parent=11 // pred_check_branch
          %760 = sbr.rel (%p758) target = $region28
        $region27: #{tpu_custom_call.1} parent=11 // pred_region
          %762 = vsyncadd [#allocation10], 0
          %s764 = sshll.u32 %s4, 4
          %s765 = int_to_ptr.hbm [resolvable:$true] %s764
          %s766 = sshll.u32 [#allocation9], 4
          %s767 = int_to_ptr.vmem [resolvable:$true] %s766
          %769 = dma.hbm_to_vmem [thread:$0]  %s765, 16, %s767, [#allocation10]
        $region28: #{tpu_custom_call.1} parent=11 // pred_fallthru
          _
      $region12: #{tpu_custom_call.1} parent=5 // pred_fallthru
        _
      %p770 = scmp.lt.s32.totalorder %s37, 4
      // Predicated region
      $region29: #{tpu_custom_call.1} parent=5 // pred_check
        %p771 = pneg %p770
      $region30: #{tpu_custom_call.1} parent=5 // pred_check_branch
        %773 = sbr.rel (%p771) target = $region32
      $region31: #{tpu_custom_call.1} parent=5 // pred_region
        // Predicated region
        $region33: #{tpu_custom_call.1} parent=31 // pred_check
          %p774 = pneg %p69
        $region34: #{tpu_custom_call.1} parent=31 // pred_check_branch
          %776 = sbr.rel (%p774) target = $region36
        $region35: #{tpu_custom_call.1} parent=31 // pred_region
          %p777 = scmp.lt.s32.totalorder %s44, 1
          %s778 = scalar_select %p777, %s44, 1
          %s779 = smul.addr %s778, 8
          %s780 = scalar_lea.vmem %s0, %s779
        $region36: #{tpu_custom_call.1} parent=31 // pred_fallthru
          _
        // Predicated region
        $region37: #{tpu_custom_call.1} parent=31 // pred_check
          %p781 = pneg %p179
        $region38: #{tpu_custom_call.1} parent=31 // pred_check_branch
          %783 = sbr.rel (%p781) target = $region40
        $region39: #{tpu_custom_call.1} parent=31 // pred_region
          %p784 = scmp.lt.s32.totalorder %s45, 1
          %s785 = scalar_select %p784, %s45, 1
          %s786 = smul.addr %s785, 4
          %s787 = smul.addr %s786, 4
          %s788 = scalar_lea.vmem %s5, %s787
        $region40: #{tpu_custom_call.1} parent=31 // pred_fallthru
          _
        // Predicated region
        $region41: #{tpu_custom_call.1} parent=31 // pred_check
          %p789 = pneg %p205
        $region42: #{tpu_custom_call.1} parent=31 // pred_check_branch
          %791 = sbr.rel (%p789) target = $region44
        $region43: #{tpu_custom_call.1} parent=31 // pred_region
          %p792 = scmp.lt.s32.totalorder %s45, 1
          %s793 = scalar_select %p792, %s45, 1
          %s794 = scalar_lea.vmem %s6, %s793
        $region44: #{tpu_custom_call.1} parent=31 // pred_fallthru
          _
        // Predicated region
        $region45: #{tpu_custom_call.1} parent=31 // pred_check
          %p795 = pneg %p231
        $region46: #{tpu_custom_call.1} parent=31 // pred_check_branch
          %797 = sbr.rel (%p795) target = $region48
        $region47: #{tpu_custom_call.1} parent=31 // pred_region
          %p798 = scmp.lt.s32.totalorder %s45, 1
          %s799 = scalar_select %p798, %s45, 1
          %s800 = smul.addr %s799, 4
          %s801 = smul.addr %s800, 4
          %s802 = scalar_lea.vmem %s7, %s801
        $region48: #{tpu_custom_call.1} parent=31 // pred_fallthru
          _
        // Predicated region
        $region49: #{tpu_custom_call.1} parent=31 // pred_check
          %p803 = pneg %p257
        $region50: #{tpu_custom_call.1} parent=31 // pred_check_branch
          %805 = sbr.rel (%p803) target = $region52
        $region51: #{tpu_custom_call.1} parent=31 // pred_region
          %p806 = scmp.lt.s32.totalorder %s45, 1
          %s807 = scalar_select %p806, %s45, 1
          %s808 = scalar_lea.vmem %s8, %s807
        $region52: #{tpu_custom_call.1} parent=31 // pred_fallthru
          _
        // Predicated region
        $region53: #{tpu_custom_call.1} parent=31 // pred_check
          %p809 = pneg %p283
        $region54: #{tpu_custom_call.1} parent=31 // pred_check_branch
          %811 = sbr.rel (%p809) target = $region56
        $region55: #{tpu_custom_call.1} parent=31 // pred_region
          %p812 = scmp.lt.s32.totalorder %s45, 1
          %s813 = scalar_select %p812, %s45, 1
          %s814 = smul.addr %s813, 2
          %s815 = smul.addr %s814, 4
          %s816 = scalar_lea.vmem %s9, %s815
        $region56: #{tpu_custom_call.1} parent=31 // pred_fallthru
          _
        // Predicated region
        $region57: #{tpu_custom_call.1} parent=31 // pred_check
          %p817 = pneg %p309
        $region58: #{tpu_custom_call.1} parent=31 // pred_check_branch
          %819 = sbr.rel (%p817) target = $region60
        $region59: #{tpu_custom_call.1} parent=31 // pred_region
          %p820 = scmp.lt.s32.totalorder %s45, 1
          %s821 = scalar_select %p820, %s45, 1
          %s822 = scalar_lea.vmem %s10, %s821
        $region60: #{tpu_custom_call.1} parent=31 // pred_fallthru
          _
        // Predicated region
        $region61: #{tpu_custom_call.1} parent=31 // pred_check
          %p823 = pneg %p335
        $region62: #{tpu_custom_call.1} parent=31 // pred_check_branch
          %825 = sbr.rel (%p823) target = $region64
        $region63: #{tpu_custom_call.1} parent=31 // pred_region
          %p826 = scmp.lt.s32.totalorder %s45, 1
          %s827 = scalar_select %p826, %s45, 1
          %s828 = smul.addr %s827, 4
          %s829 = smul.addr %s828, 4
          %s830 = scalar_lea.vmem %s11, %s829
        $region64: #{tpu_custom_call.1} parent=31 // pred_fallthru
          _
        // Predicated region
        $region65: #{tpu_custom_call.1} parent=31 // pred_check
          %p831 = pneg %p361
        $region66: #{tpu_custom_call.1} parent=31 // pred_check_branch
          %833 = sbr.rel (%p831) target = $region68
        $region67: #{tpu_custom_call.1} parent=31 // pred_region
          %p834 = scmp.lt.s32.totalorder %s45, 1
          %s835 = scalar_select %p834, %s45, 1
          %s836 = scalar_lea.vmem %s12, %s835
        $region68: #{tpu_custom_call.1} parent=31 // pred_fallthru
          _
        // Predicated region
        $region69: #{tpu_custom_call.1} parent=31 // pred_check
          %p837 = pneg %p387
        $region70: #{tpu_custom_call.1} parent=31 // pred_check_branch
          %839 = sbr.rel (%p837) target = $region72
        $region71: #{tpu_custom_call.1} parent=31 // pred_region
          %p840 = scmp.lt.s32.totalorder %s45, 1
          %s841 = scalar_select %p840, %s45, 1
          %s842 = smul.addr %s841, 2
          %s843 = smul.addr %s842, 4
          %s844 = scalar_lea.vmem %s13, %s843
        $region72: #{tpu_custom_call.1} parent=31 // pred_fallthru
          _
        // Predicated region
        $region73: #{tpu_custom_call.1} parent=31 // pred_check
          %p845 = pneg %p413
        $region74: #{tpu_custom_call.1} parent=31 // pred_check_branch
          %847 = sbr.rel (%p845) target = $region76
        $region75: #{tpu_custom_call.1} parent=31 // pred_region
          %p848 = scmp.lt.s32.totalorder %s45, 1
          %s849 = scalar_select %p848, %s45, 1
          %s850 = scalar_lea.vmem %s14, %s849
        $region76: #{tpu_custom_call.1} parent=31 // pred_fallthru
          _
        // Predicated region
        $region77: #{tpu_custom_call.1} parent=31 // pred_check
          %p851 = pneg %p439
        $region78: #{tpu_custom_call.1} parent=31 // pred_check_branch
          %853 = sbr.rel (%p851) target = $region80
        $region79: #{tpu_custom_call.1} parent=31 // pred_region
          %p854 = scmp.lt.s32.totalorder %s45, 1
          %s855 = scalar_select %p854, %s45, 1
          %s856 = smul.addr %s855, 4
          %s857 = smul.addr %s856, 4
          %s858 = scalar_lea.vmem %s15, %s857
        $region80: #{tpu_custom_call.1} parent=31 // pred_fallthru
          _
        // Predicated region
        $region81: #{tpu_custom_call.1} parent=31 // pred_check
          %p859 = pneg %p465
        $region82: #{tpu_custom_call.1} parent=31 // pred_check_branch
          %861 = sbr.rel (%p859) target = $region84
        $region83: #{tpu_custom_call.1} parent=31 // pred_region
          %p862 = scmp.lt.s32.totalorder %s45, 1
          %s863 = scalar_select %p862, %s45, 1
          %s864 = scalar_lea.vmem %s16, %s863
        $region84: #{tpu_custom_call.1} parent=31 // pred_fallthru
          _
        // Predicated region
        $region85: #{tpu_custom_call.1} parent=31 // pred_check
          %p865 = pneg %p491
        $region86: #{tpu_custom_call.1} parent=31 // pred_check_branch
          %867 = sbr.rel (%p865) target = $region88
        $region87: #{tpu_custom_call.1} parent=31 // pred_region
          %p868 = scmp.lt.s32.totalorder %s45, 1
          %s869 = scalar_select %p868, %s45, 1
          %s870 = smul.addr %s869, 4
          %s871 = smul.addr %s870, 4
          %s872 = scalar_lea.vmem %s17, %s871
        $region88: #{tpu_custom_call.1} parent=31 // pred_fallthru
          _
        // Predicated region
        $region89: #{tpu_custom_call.1} parent=31 // pred_check
          %p873 = pneg %p517
        $region90: #{tpu_custom_call.1} parent=31 // pred_check_branch
          %875 = sbr.rel (%p873) target = $region92
        $region91: #{tpu_custom_call.1} parent=31 // pred_region
          %p876 = scmp.lt.s32.totalorder %s45, 1
          %s877 = scalar_select %p876, %s45, 1
          %s878 = scalar_lea.vmem %s18, %s877
        $region92: #{tpu_custom_call.1} parent=31 // pred_fallthru
          _
        // Predicated region
        $region93: #{tpu_custom_call.1} parent=31 // pred_check
          %p879 = pneg %p543
        $region94: #{tpu_custom_call.1} parent=31 // pred_check_branch
          %881 = sbr.rel (%p879) target = $region96
        $region95: #{tpu_custom_call.1} parent=31 // pred_region
          %p882 = scmp.lt.s32.totalorder %s45, 1
          %s883 = scalar_select %p882, %s45, 1
          %s884 = smul.addr %s883, 8
          %s885 = smul.addr %s884, 4
          %s886 = scalar_lea.vmem %s19, %s885
        $region96: #{tpu_custom_call.1} parent=31 // pred_fallthru
          _
        // Predicated region
        $region97: #{tpu_custom_call.1} parent=31 // pred_check
          %p887 = pneg %p569
        $region98: #{tpu_custom_call.1} parent=31 // pred_check_branch
          %889 = sbr.rel (%p887) target = $region100
        $region99: #{tpu_custom_call.1} parent=31 // pred_region
          %p890 = scmp.lt.s32.totalorder %s45, 1
          %s891 = scalar_select %p890, %s45, 1
          %s892 = scalar_lea.vmem %s20, %s891
        $region100: #{tpu_custom_call.1} parent=31 // pred_fallthru
          _
        // Predicated region
        $region101: #{tpu_custom_call.1} parent=31 // pred_check
          %p893 = pneg %p595
        $region102: #{tpu_custom_call.1} parent=31 // pred_check_branch
          %895 = sbr.rel (%p893) target = $region104
        $region103: #{tpu_custom_call.1} parent=31 // pred_region
          %p896 = scmp.lt.s32.totalorder %s45, 1
          %s897 = scalar_select %p896, %s45, 1
          %s898 = scalar_lea.vmem %s21, %s897
        $region104: #{tpu_custom_call.1} parent=31 // pred_fallthru
          _
        // Predicated region
        $region105: #{tpu_custom_call.1} parent=31 // pred_check
          %p899 = pneg %p621
        $region106: #{tpu_custom_call.1} parent=31 // pred_check_branch
          %901 = sbr.rel (%p899) target = $region108
        $region107: #{tpu_custom_call.1} parent=31 // pred_region
          %p902 = scmp.lt.s32.totalorder %s45, 1
          %s903 = scalar_select %p902, %s45, 1
          %s904 = scalar_lea.vmem %s22, %s903
        $region108: #{tpu_custom_call.1} parent=31 // pred_fallthru
          _
        // Predicated region
        $region109: #{tpu_custom_call.1} parent=31 // pred_check
          %p905 = pneg %p647
        $region110: #{tpu_custom_call.1} parent=31 // pred_check_branch
          %907 = sbr.rel (%p905) target = $region112
        $region111: #{tpu_custom_call.1} parent=31 // pred_region
          %s908 = sand.u32 %s37, 1
          %s909 = scalar_lea.sflag [#allocation4], %s908
          %s910 = sand.u32 %s637, 1
          %s911 = scalar_lea.vmem [#allocation11], %s910
          %913 = vsyncadd %s909, 0
          %s914 = scalar_lea.hbm %s23, %s45
          %s916 = sshll.u32 %s914, 4
          %s917 = int_to_ptr.hbm [resolvable:$true] %s916
          %s918 = sshll.u32 %s911, 4
          %s919 = int_to_ptr.vmem [resolvable:$true] %s918
          %921 = dma.hbm_to_vmem [thread:$0]  %s917, 16, %s919, %s909
        $region112: #{tpu_custom_call.1} parent=31 // pred_fallthru
          _
        // Predicated region
        $region113: #{tpu_custom_call.1} parent=31 // pred_check
          %p922 = pneg %p673
        $region114: #{tpu_custom_call.1} parent=31 // pred_check_branch
          %924 = sbr.rel (%p922) target = $region116
        $region115: #{tpu_custom_call.1} parent=31 // pred_region
          %p925 = scmp.lt.s32.totalorder %s45, 1
          %s926 = scalar_select %p925, %s45, 1
          %s927 = scalar_lea.vmem %s24, %s926
        $region116: #{tpu_custom_call.1} parent=31 // pred_fallthru
          _
      $region32: #{tpu_custom_call.1} parent=5 // pred_fallthru
        _
      %p928 = scmp.le.s32.totalorder 1, %s37
      %p929 = scmp.lt.s32.totalorder %s37, 5
      %p930 = pnand %p928, %p929
      %p931 = pneg %p930
      // Predicated region
      $region117: #{tpu_custom_call.1} parent=5 // pred_check
        _
      $region118: #{tpu_custom_call.1} parent=5 // pred_check_branch
        %933 = sbr.rel (%p930) target = $region120
      $region119: #{tpu_custom_call.1} parent=5 // pred_region
        %s934 = ssub.s32 %s37, 1
        // Predicated region
        $region121: #{tpu_custom_call.1} parent=119 // pred_check
          %p935 = pneg %p96
        $region122: #{tpu_custom_call.1} parent=119 // pred_check_branch
          %937 = sbr.rel (%p935) target = $region124
        $region123: #{tpu_custom_call.1} parent=119 // pred_region
          %939 = dma.done [#allocation4], 128
        $region124: #{tpu_custom_call.1} parent=119 // pred_fallthru
          _
        // Predicated region
        $region125: #{tpu_custom_call.1} parent=119 // pred_check
          %p940 = pneg %p117
        $region126: #{tpu_custom_call.1} parent=119 // pred_check_branch
          %942 = sbr.rel (%p940) target = $region128
        $region127: #{tpu_custom_call.1} parent=119 // pred_region
          %944 = dma.done [#allocation7], 128
        $region128: #{tpu_custom_call.1} parent=119 // pred_fallthru
          _
        // Predicated region
        $region129: #{tpu_custom_call.1} parent=119 // pred_check
          %p945 = pneg %p138
        $region130: #{tpu_custom_call.1} parent=119 // pred_check_branch
          %947 = sbr.rel (%p945) target = $region132
        $region131: #{tpu_custom_call.1} parent=119 // pred_region
          %949 = dma.done [#allocation7], 128
        $region132: #{tpu_custom_call.1} parent=119 // pred_fallthru
          _
        // Predicated region
        $region133: #{tpu_custom_call.1} parent=119 // pred_check
          %p950 = pneg %p159
        $region134: #{tpu_custom_call.1} parent=119 // pred_check_branch
          %952 = sbr.rel (%p950) target = $region136
        $region135: #{tpu_custom_call.1} parent=119 // pred_region
          %954 = dma.done [#allocation10], 16
        $region136: #{tpu_custom_call.1} parent=119 // pred_fallthru
          _
        %s955 = sand.u32 %s42, 1
        %s956 = scalar_lea.sflag [#allocation4], %s955
        %s957 = sand.u32 %s640, 1
        %s958 = scalar_lea.vmem [#allocation11], %s957
        // Predicated region
        $region137: #{tpu_custom_call.1} parent=119 // pred_check
          %p959 = pneg %p653
        $region138: #{tpu_custom_call.1} parent=119 // pred_check_branch
          %961 = sbr.rel (%p959) target = $region140
        $region139: #{tpu_custom_call.1} parent=119 // pred_region
          %963 = dma.done %s956, 16
        $region140: #{tpu_custom_call.1} parent=119 // pred_fallthru
          _
        %p964 = scmp.lt.s32.totalorder %s46, 1
        %s965 = scalar_select %p964, %s46, 1
        %s966 = smul.addr %s965, 8
        %s967 = scalar_lea.vmem %s0, %s966
        %p968 = pneg %p75
        %p969 = pneg %p72
        %p970 = pneg %p96
        %p971 = pneg %p93
        %p972 = pneg %p117
        %p973 = pneg %p114
        %p974 = pneg %p138
        %p975 = pneg %p135
        %p976 = pneg %p159
        %p977 = pneg %p156
        %p978 = scmp.lt.s32.totalorder %s47, 1
        %s979 = scalar_select %p978, %s47, 1
        %s980 = smul.addr %s979, 4
        %s981 = smul.addr %s980, 4
        %s982 = scalar_lea.vmem %s5, %s981
        %p983 = pneg %p185
        %p984 = pneg %p182
        %p985 = scmp.lt.s32.totalorder %s47, 1
        %s986 = scalar_select %p985, %s47, 1
        %s987 = scalar_lea.vmem %s6, %s986
        %p988 = pneg %p211
        %p989 = pneg %p208
        %p990 = scmp.lt.s32.totalorder %s47, 1
        %s991 = scalar_select %p990, %s47, 1
        %s992 = smul.addr %s991, 4
        %s993 = smul.addr %s992, 4
        %s994 = scalar_lea.vmem %s7, %s993
        %p995 = pneg %p237
        %p996 = pneg %p234
        %p997 = scmp.lt.s32.totalorder %s47, 1
        %s998 = scalar_select %p997, %s47, 1
        %s999 = scalar_lea.vmem %s8, %s998
        %p1000 = pneg %p263
        %p1001 = pneg %p260
        %p1002 = scmp.lt.s32.totalorder %s47, 1
        %s1003 = scalar_select %p1002, %s47, 1
        %s1004 = smul.addr %s1003, 2
        %s1005 = smul.addr %s1004, 4
        %s1006 = scalar_lea.vmem %s9, %s1005
        %p1007 = pneg %p289
        %p1008 = pneg %p286
        %p1009 = scmp.lt.s32.totalorder %s47, 1
        %s1010 = scalar_select %p1009, %s47, 1
        %s1011 = scalar_lea.vmem %s10, %s1010
        %p1012 = pneg %p315
        %p1013 = pneg %p312
        %p1014 = scmp.lt.s32.totalorder %s47, 1
        %s1015 = scalar_select %p1014, %s47, 1
        %s1016 = smul.addr %s1015, 4
        %s1017 = smul.addr %s1016, 4
        %s1018 = scalar_lea.vmem %s11, %s1017
        %p1019 = pneg %p341
        %p1020 = pneg %p338
        %p1021 = scmp.lt.s32.totalorder %s47, 1
        %s1022 = scalar_select %p1021, %s47, 1
        %s1023 = scalar_lea.vmem %s12, %s1022
        %p1024 = pneg %p367
        %p1025 = pneg %p364
        %p1026 = scmp.lt.s32.totalorder %s47, 1
        %s1027 = scalar_select %p1026, %s47, 1
        %s1028 = smul.addr %s1027, 2
        %s1029 = smul.addr %s1028, 4
        %s1030 = scalar_lea.vmem %s13, %s1029
        %p1031 = pneg %p393
        %p1032 = pneg %p390
        %p1033 = scmp.lt.s32.totalorder %s47, 1
        %s1034 = scalar_select %p1033, %s47, 1
        %s1035 = scalar_lea.vmem %s14, %s1034
        %p1036 = pneg %p419
        %p1037 = pneg %p416
        %p1038 = scmp.lt.s32.totalorder %s47, 1
        %s1039 = scalar_select %p1038, %s47, 1
        %s1040 = smul.addr %s1039, 4
        %s1041 = smul.addr %s1040, 4
        %s1042 = scalar_lea.vmem %s15, %s1041
        %p1043 = pneg %p445
        %p1044 = pneg %p442
        %p1045 = scmp.lt.s32.totalorder %s47, 1
        %s1046 = scalar_select %p1045, %s47, 1
        %s1047 = scalar_lea.vmem %s16, %s1046
        %p1048 = pneg %p471
        %p1049 = pneg %p468
        %p1050 = scmp.lt.s32.totalorder %s47, 1
        %s1051 = scalar_select %p1050, %s47, 1
        %s1052 = smul.addr %s1051, 4
        %s1053 = smul.addr %s1052, 4
        %s1054 = scalar_lea.vmem %s17, %s1053
        %p1055 = pneg %p497
        %p1056 = pneg %p494
        %p1057 = scmp.lt.s32.totalorder %s47, 1
        %s1058 = scalar_select %p1057, %s47, 1
        %s1059 = scalar_lea.vmem %s18, %s1058
        %p1060 = pneg %p523
        %p1061 = pneg %p520
        %p1062 = scmp.lt.s32.totalorder %s47, 1
        %s1063 = scalar_select %p1062, %s47, 1
        %s1064 = smul.addr %s1063, 8
        %s1065 = smul.addr %s1064, 4
        %s1066 = scalar_lea.vmem %s19, %s1065
        %p1067 = pneg %p549
        %p1068 = pneg %p546
        %p1069 = scmp.lt.s32.totalorder %s47, 1
        %s1070 = scalar_select %p1069, %s47, 1
        %s1071 = scalar_lea.vmem %s20, %s1070
        %p1072 = pneg %p575
        %p1073 = pneg %p572
        %p1074 = scmp.lt.s32.totalorder %s47, 1
        %s1075 = scalar_select %p1074, %s47, 1
        %s1076 = scalar_lea.vmem %s21, %s1075
        %p1077 = pneg %p601
        %p1078 = pneg %p598
        %p1079 = scmp.lt.s32.totalorder %s47, 1
        %s1080 = scalar_select %p1079, %s47, 1
        %s1081 = scalar_lea.vmem %s22, %s1080
        %p1082 = pneg %p627
        %p1083 = pneg %p624
        %s1084 = sand.u32 %s42, 1
        %s1085 = scalar_lea.sflag [#allocation4], %s1084
        %s1086 = sand.u32 %s640, 1
        %s1087 = scalar_lea.vmem [#allocation11], %s1086
        %p1088 = pneg %p653
        %p1089 = pneg %p650
        %p1090 = scmp.lt.s32.totalorder %s47, 1
        %s1091 = scalar_select %p1090, %s47, 1
        %s1092 = scalar_lea.vmem %s24, %s1091
        %p1093 = pneg %p679
        %p1094 = pneg %p676
        %p1095 = pneg %p705
        %p1096 = pneg %p702
        %s1097 = sand.u32 %s692, 1
        %s1098 = scalar_lea.sflag [#allocation5], %s1097
        %s1099 = sand.u32 %s692, 1
        %s1100 = smul.addr %s1099, 8
        %s1101 = scalar_lea.vmem [#allocation12], %s1100
        %p1102 = scmp.lt.s32.totalorder %s46, 1
        %s1103 = scalar_select %p1102, %s46, 1
        %s1104 = smul.addr %s1103, 8
        %s1105 = scalar_lea.vmem %s0, %s1104
        %p1106 = scmp.lt.s32.totalorder %s47, 1
        %s1107 = scalar_select %p1106, %s47, 1
        %s1108 = smul.addr %s1107, 4
        %s1109 = smul.addr %s1108, 4
        %s1110 = scalar_lea.vmem %s5, %s1109
        %p1111 = scmp.lt.s32.totalorder %s47, 1
        %s1112 = scalar_select %p1111, %s47, 1
        %s1113 = scalar_lea.vmem %s6, %s1112
        %p1114 = scmp.lt.s32.totalorder %s47, 1
        %s1115 = scalar_select %p1114, %s47, 1
        %s1116 = smul.addr %s1115, 4
        %s1117 = smul.addr %s1116, 4
        %s1118 = scalar_lea.vmem %s7, %s1117
        %p1119 = scmp.lt.s32.totalorder %s47, 1
        %s1120 = scalar_select %p1119, %s47, 1
        %s1121 = scalar_lea.vmem %s8, %s1120
        %p1122 = scmp.lt.s32.totalorder %s47, 1
        %s1123 = scalar_select %p1122, %s47, 1
        %s1124 = smul.addr %s1123, 2
        %s1125 = smul.addr %s1124, 4
        %s1126 = scalar_lea.vmem %s9, %s1125
        %p1127 = scmp.lt.s32.totalorder %s47, 1
        %s1128 = scalar_select %p1127, %s47, 1
        %s1129 = scalar_lea.vmem %s10, %s1128
        %p1130 = scmp.lt.s32.totalorder %s47, 1
        %s1131 = scalar_select %p1130, %s47, 1
        %s1132 = smul.addr %s1131, 4
        %s1133 = smul.addr %s1132, 4
        %s1134 = scalar_lea.vmem %s11, %s1133
        %p1135 = scmp.lt.s32.totalorder %s47, 1
        %s1136 = scalar_select %p1135, %s47, 1
        %s1137 = scalar_lea.vmem %s12, %s1136
        %p1138 = scmp.lt.s32.totalorder %s47, 1
        %s1139 = scalar_select %p1138, %s47, 1
        %s1140 = smul.addr %s1139, 2
        %s1141 = smul.addr %s1140, 4
        %s1142 = scalar_lea.vmem %s13, %s1141
        %p1143 = scmp.lt.s32.totalorder %s47, 1
        %s1144 = scalar_select %p1143, %s47, 1
        %s1145 = scalar_lea.vmem %s14, %s1144
        %p1146 = scmp.lt.s32.totalorder %s47, 1
        %s1147 = scalar_select %p1146, %s47, 1
        %s1148 = smul.addr %s1147, 4
        %s1149 = smul.addr %s1148, 4
        %s1150 = scalar_lea.vmem %s15, %s1149
        %p1151 = scmp.lt.s32.totalorder %s47, 1
        %s1152 = scalar_select %p1151, %s47, 1
        %s1153 = scalar_lea.vmem %s16, %s1152
        %p1154 = scmp.lt.s32.totalorder %s47, 1
        %s1155 = scalar_select %p1154, %s47, 1
        %s1156 = smul.addr %s1155, 4
        %s1157 = smul.addr %s1156, 4
        %s1158 = scalar_lea.vmem %s17, %s1157
        %p1159 = scmp.lt.s32.totalorder %s47, 1
        %s1160 = scalar_select %p1159, %s47, 1
        %s1161 = scalar_lea.vmem %s18, %s1160
        %p1162 = scmp.lt.s32.totalorder %s47, 1
        %s1163 = scalar_select %p1162, %s47, 1
        %s1164 = smul.addr %s1163, 8
        %s1165 = smul.addr %s1164, 4
        %s1166 = scalar_lea.vmem %s19, %s1165
        %p1167 = scmp.lt.s32.totalorder %s47, 1
        %s1168 = scalar_select %p1167, %s47, 1
        %s1169 = scalar_lea.vmem %s20, %s1168
        %p1170 = scmp.lt.s32.totalorder %s47, 1
        %s1171 = scalar_select %p1170, %s47, 1
        %s1172 = scalar_lea.vmem %s21, %s1171
        %p1173 = scmp.lt.s32.totalorder %s47, 1
        %s1174 = scalar_select %p1173, %s47, 1
        %s1175 = scalar_lea.vmem %s22, %s1174
        %p1176 = scmp.lt.s32.totalorder %s47, 1
        %s1177 = scalar_select %p1176, %s47, 1
        %s1178 = scalar_lea.vmem %s24, %s1177
        %p1180 = scmp.eq.s32.totalorder %s47, 0
        // Predicated region
        $region141: #{tpu_custom_call.1} parent=119 // pred_check
          %p1181 = pneg %p1180
        $region142: #{tpu_custom_call.1} parent=119 // pred_check_branch
          %1183 = sbr.rel (%p1181) target = $region144
        $region143: #{tpu_custom_call.1} parent=119 // pred_region
          %v1184 = vld [vmem:[%s1105] sm:$0xff]
          %v1185 = vpack.c.bf16 %v1184, %v1184
          %v1186 = vld [vmem:[#allocation8] sm:$0xf]
          %v1187 = vld [vmem:[#allocation8 + $0x4] sm:$0xf]
          %v1188 = vld [vmem:[#allocation9] sm:$0x1]
          %v1190 = vperm.slane %v1188, 0
          %v1194 = vunpack.c.l.b16 %v1186
          %v1195 = vunpack.c.l.b16 %v1187
          %v1196 = vpack.c.b16 %v1195, %v1194
          %vm1198 = vcmask 130048
          %v1200 = vsel %vm1198, %v1185, 0
          %1202 = vmatpush.bf16.msra.mxu0 0
          %1203 = vmatpush.bf16.msra.mxu0 0
          %1204 = vmatpush.bf16.msra.mxu0 0
          %1205 = vmatpush.bf16.msra.mxu0 0
          %1206 = vmatpush.bf16.msra.mxu0 0
          %1207 = vmatpush.bf16.msra.mxu0 0
          %1208 = vmatpush.bf16.msra.mxu0 0
          %1209 = vmatpush.bf16.msra.mxu0 %v1196
          %1210 = vmatmul.bf16.gmra.mxu0 %v1200
          %v1211 = vpop.f32.mrf.mxu0
          %v1212 = vadd.f32 %v1190, %v1211
          %v1213 = vpop.f32.mrf.mxu0
          %1214 = vdwg.mxu0
          %v1215 = vld [vmem:[#allocation3] sm:$0xff]
          %v1216 = vadd.f32 %v1212, %v1215
          %vm1217 = vcmask 261120
          %1218 = vst.msk [vmem:[#allocation2] sm:$0xff] %vm1217, %v1216
        $region144: #{tpu_custom_call.1} parent=119 // pred_fallthru
          _
        %v1219 = vld [vmem:[#allocation2] sm:$0xff]
        %v1220 = vpack.c.bf16 %v1219, %v1219
        %v1221 = vld [vmem:[#allocation6] sm:$0xff]
        %v1222 = vld [vmem:[%s1110] sm:$0xf]
        %v1223 = vld [vmem:[%s1110 + $0x4] sm:$0xf]
        %v1224 = vld [vmem:[%s1110 + $0x8] sm:$0xf]
        %v1225 = vld [vmem:[%s1110 + $0xc] sm:$0xf]
        %v1226 = vld [vmem:[%s1113] sm:$0x1]
        %v1228 = vperm.slane %v1226, 0
        %v1234 = vunpack.c.l.b16 %v1222
        %v1235 = vunpack.c.l.b16 %v1223
        %v1236 = vunpack.c.l.b16 %v1224
        %v1237 = vunpack.c.l.b16 %v1225
        %v1238 = vpack.c.b16 %v1235, %v1234
        %v1239 = vpack.c.b16 %v1237, %v1236
        %vm1242 = vcmask 261120
        %v1244 = vsel %vm1242, %v1220, 0
        %1246 = vmatpush.bf16.msra.mxu0 0
        %1247 = vmatpush.bf16.msra.mxu0 0
        %1248 = vmatpush.bf16.msra.mxu0 0
        %1249 = vmatpush.bf16.msra.mxu0 0
        %1250 = vmatpush.bf16.msra.mxu0 0
        %1251 = vmatpush.bf16.msra.mxu0 0
        %1252 = vmatpush.bf16.msra.mxu0 %v1239
        %1253 = vmatpush.bf16.msra.mxu0 %v1238
        %1254 = vmatmul.bf16.gmra.mxu0 %v1244
        %v1255 = vpop.f32.mrf.mxu0
        %v1256 = vadd.f32 %v1228, %v1255
        %v1257 = vpop.f32.mrf.mxu0
        %1258 = vdwg.mxu0
        %v1259 = vld [vmem:[%s1118] sm:$0xf]
        %v1260 = vld [vmem:[%s1118 + $0x4] sm:$0xf]
        %v1261 = vld [vmem:[%s1118 + $0x8] sm:$0xf]
        %v1262 = vld [vmem:[%s1118 + $0xc] sm:$0xf]
        %v1263 = vld [vmem:[%s1121] sm:$0x1]
        %v1265 = vperm.slane %v1263, 0
        %v1271 = vunpack.c.l.b16 %v1259
        %v1272 = vunpack.c.l.b16 %v1260
        %v1273 = vunpack.c.l.b16 %v1261
        %v1274 = vunpack.c.l.b16 %v1262
        %v1275 = vpack.c.b16 %v1272, %v1271
        %v1276 = vpack.c.b16 %v1274, %v1273
        %1279 = vmatpush.bf16.msra.mxu0 0
        %1280 = vmatpush.bf16.msra.mxu0 0
        %1281 = vmatpush.bf16.msra.mxu0 0
        %1282 = vmatpush.bf16.msra.mxu0 0
        %1283 = vmatpush.bf16.msra.mxu0 0
        %1284 = vmatpush.bf16.msra.mxu0 0
        %1285 = vmatpush.bf16.msra.mxu0 %v1276
        %1286 = vmatpush.bf16.msra.mxu0 %v1275
        %1287 = vmatmul.bf16.gmra.mxu0 %v1244
        %v1288 = vpop.f32.mrf.mxu0
        %v1289 = vadd.f32 %v1265, %v1288
        %v1290 = vpop.f32.mrf.mxu0
        %1291 = vdwg.mxu0
        %v1292 = vld [vmem:[%s1134] sm:$0xf]
        %v1293 = vld [vmem:[%s1134 + $0x4] sm:$0xf]
        %v1294 = vld [vmem:[%s1134 + $0x8] sm:$0xf]
        %v1295 = vld [vmem:[%s1134 + $0xc] sm:$0xf]
        %v1296 = vld [vmem:[%s1137] sm:$0x1]
        %v1298 = vperm.slane %v1296, 0
        %v1304 = vunpack.c.l.b16 %v1292
        %v1305 = vunpack.c.l.b16 %v1293
        %v1306 = vunpack.c.l.b16 %v1294
        %v1307 = vunpack.c.l.b16 %v1295
        %v1308 = vpack.c.b16 %v1305, %v1304
        %v1309 = vpack.c.b16 %v1307, %v1306
        %1312 = vmatpush.bf16.msra.mxu0 0
        %1313 = vmatpush.bf16.msra.mxu0 0
        %1314 = vmatpush.bf16.msra.mxu0 0
        %1315 = vmatpush.bf16.msra.mxu0 0
        %1316 = vmatpush.bf16.msra.mxu0 0
        %1317 = vmatpush.bf16.msra.mxu0 0
        %1318 = vmatpush.bf16.msra.mxu0 %v1309
        %1319 = vmatpush.bf16.msra.mxu0 %v1308
        %1320 = vmatmul.bf16.gmra.mxu0 %v1244
        %v1321 = vpop.f32.mrf.mxu0
        %v1322 = vadd.f32 %v1298, %v1321
        %v1323 = vpop.f32.mrf.mxu0
        %1324 = vdwg.mxu0
        %v1325 = vpack.c.bf16 %v1289, %v1289
        %v1326 = vpack.c.bf16 %v1322, %v1322
        %v1327 = vld [vmem:[%s1126] sm:$0xf]
        %v1328 = vld [vmem:[%s1126 + $0x4] sm:$0xf]
        %v1329 = vld [vmem:[%s1129] sm:$0x1]
        %v1331 = vperm.slane %v1329, 0
        %v1335 = vunpack.c.l.b16 %v1327
        %v1336 = vunpack.c.l.b16 %v1328
        %v1337 = vpack.c.b16 %v1336, %v1335
        %vm1339 = vcmask 130048
        %v1341 = vsel %vm1339, %v1325, 0
        %1343 = vmatpush.bf16.msra.mxu0 0
        %1344 = vmatpush.bf16.msra.mxu0 0
        %1345 = vmatpush.bf16.msra.mxu0 0
        %1346 = vmatpush.bf16.msra.mxu0 0
        %1347 = vmatpush.bf16.msra.mxu0 0
        %1348 = vmatpush.bf16.msra.mxu0 0
        %1349 = vmatpush.bf16.msra.mxu0 0
        %1350 = vmatpush.bf16.msra.mxu0 %v1337
        %1351 = vmatmul.bf16.gmra.mxu0 %v1341
        %v1352 = vpop.f32.mrf.mxu0
        %v1353 = vadd.f32 %v1331, %v1352
        %v1354 = vpop.f32.mrf.mxu0
        %1355 = vdwg.mxu0
        %v1356 = vld [vmem:[%s1142] sm:$0xf]
        %v1357 = vld [vmem:[%s1142 + $0x4] sm:$0xf]
        %v1358 = vld [vmem:[%s1145] sm:$0x1]
        %v1360 = vperm.slane %v1358, 0
        %v1364 = vunpack.c.l.b16 %v1356
        %v1365 = vunpack.c.l.b16 %v1357
        %v1366 = vpack.c.b16 %v1365, %v1364
        %v1369 = vsel %vm1339, %v1326, 0
        %1371 = vmatpush.bf16.msra.mxu0 0
        %1372 = vmatpush.bf16.msra.mxu0 0
        %1373 = vmatpush.bf16.msra.mxu0 0
        %1374 = vmatpush.bf16.msra.mxu0 0
        %1375 = vmatpush.bf16.msra.mxu0 0
        %1376 = vmatpush.bf16.msra.mxu0 0
        %1377 = vmatpush.bf16.msra.mxu0 0
        %1378 = vmatpush.bf16.msra.mxu0 %v1366
        %1379 = vmatmul.bf16.gmra.mxu0 %v1369
        %v1380 = vpop.f32.mrf.mxu0
        %v1381 = vadd.f32 %v1360, %v1380
        %v1382 = vpop.f32.mrf.mxu0
        %1383 = vdwg.mxu0
        %v1384 = vpack.c.bf16 %v1256, %v1256
        %v1385 = vpack.c.bf16 %v1353, %v1353
        %v1386 = vpack.c.bf16 %v1381, %v1381
        %vm1387 = vcmask 64512
        %v1389 = vsel %vm1387, %v1384, 0
        %v1392 = vsel %vm1387, %v1385, 0
        %1394 = vmatpush.bf16.xpose.msra.mxu0 0
        %1395 = vmatpush.bf16.xpose.msra.mxu0 0
        %1396 = vmatpush.bf16.xpose.msra.mxu0 0
        %1397 = vmatpush.bf16.xpose.msra.mxu0 0
        %1398 = vmatpush.bf16.xpose.msra.mxu0 0
        %1399 = vmatpush.bf16.xpose.msra.mxu0 0
        %1400 = vmatpush.bf16.xpose.msra.mxu0 0
        %1401 = vmatpush.bf16.xpose.msra.mxu0 %v1392
        %1402 = vmatmul.bf16.gmra.mxu0 %v1389
        %v1403 = vpop.f32.mrf.mxu0
        %v1404 = vadd.f32 %v1221, %v1403
        %v1405 = vpop.f32.mrf.mxu0
        %1406 = vdwg.mxu0
        %v1407 = vsel %vm1387, %v1404, -inf
        %1408 = vmax.xlane.f32.xlu0 %v1407
        %v1409 = vpop.xlane.xlu0 %1408
        %v1410 = vsub.f32 %v1404, %v1409
        %v1411 = vmul.f32 %v1410, 1.442695
        %v1412 = vpow.pop %v1411
        %v1413 = vsel %vm1387, %v1412, 0.0
        %1414 = vadd.xlane.f32.xlu0 %v1413
        %v1415 = vpop.xlane.xlu0 %1414
        %v1416 = vrcp.pop %v1415
        %v1417 = vmul.f32 %v1412, %v1416
        %v1418 = vpack.c.bf16 %v1417, %v1417
        %v1420 = vsel %vm1387, %v1418, 0
        %vm1422 = vcmask 1043456
        %v1424 = vsel %vm1422, %v1386, 0
        %1426 = vmatpush.bf16.msra.mxu0 0
        %1427 = vmatpush.bf16.msra.mxu0 0
        %1428 = vmatpush.bf16.msra.mxu0 0
        %1429 = vmatpush.bf16.msra.mxu0 0
        %1430 = vmatpush.bf16.msra.mxu0 0
        %1431 = vmatpush.bf16.msra.mxu0 0
        %1432 = vmatpush.bf16.msra.mxu0 0
        %1433 = vmatpush.bf16.msra.mxu0 %v1424
        %1434 = vmatmul.bf16.gmra.mxu0 %v1420
        %v1435 = vpop.f32.mrf.mxu0
        %v1436 = vadd.f32 0.0, %v1435
        %v1437 = vpop.f32.mrf.mxu0
        %1438 = vdwg.mxu0
        %v1440 = vunpack.c.l.b16 %v1384
        %v1441 = vpack.c.b16 %v1440, %v1440
        %1442 = vrot.lane.b32.xlu0 %v1441, 120
        %v1443 = vpop.permute.xlu0 %1442
        %v1445 = vunpack.c.l.b16 %v1385
        %v1446 = vpack.c.b16 %v1445, %v1445
        %1447 = vrot.lane.b32.xlu0 %v1446, 120
        %v1448 = vpop.permute.xlu0 %1447
        %v1450 = vsel %vm1387, %v1443, 0
        %v1453 = vsel %vm1387, %v1448, 0
        %1455 = vmatpush.bf16.xpose.msra.mxu0 0
        %1456 = vmatpush.bf16.xpose.msra.mxu0 0
        %1457 = vmatpush.bf16.xpose.msra.mxu0 0
        %1458 = vmatpush.bf16.xpose.msra.mxu0 0
        %1459 = vmatpush.bf16.xpose.msra.mxu0 0
        %1460 = vmatpush.bf16.xpose.msra.mxu0 0
        %1461 = vmatpush.bf16.xpose.msra.mxu0 0
        %1462 = vmatpush.bf16.xpose.msra.mxu0 %v1453
        %1463 = vmatmul.bf16.gmra.mxu0 %v1450
        %v1464 = vpop.f32.mrf.mxu0
        %v1465 = vadd.f32 %v1221, %v1464
        %v1466 = vpop.f32.mrf.mxu0
        %1467 = vdwg.mxu0
        %v1468 = vsel %vm1387, %v1465, -inf
        %1469 = vmax.xlane.f32.xlu0 %v1468
        %v1470 = vpop.xlane.xlu0 %1469
        %v1471 = vsub.f32 %v1465, %v1470
        %v1472 = vmul.f32 %v1471, 1.442695
        %v1473 = vpow.pop %v1472
        %v1474 = vsel %vm1387, %v1473, 0.0
        %1475 = vadd.xlane.f32.xlu0 %v1474
        %v1476 = vpop.xlane.xlu0 %1475
        %v1477 = vrcp.pop %v1476
        %v1478 = vmul.f32 %v1473, %v1477
        %v1479 = vpack.c.bf16 %v1478, %v1478
        %v1481 = vunpack.c.l.b16 %v1386
        %v1482 = vpack.c.b16 %v1481, %v1481
        %1483 = vrot.lane.b32.xlu0 %v1482, 120
        %v1484 = vpop.permute.xlu0 %1483
        %v1486 = vsel %vm1387, %v1479, 0
        %v1489 = vsel %vm1422, %v1484, 0
        %1491 = vmatpush.bf16.msra.mxu0 0
        %1492 = vmatpush.bf16.msra.mxu0 0
        %1493 = vmatpush.bf16.msra.mxu0 0
        %1494 = vmatpush.bf16.msra.mxu0 0
        %1495 = vmatpush.bf16.msra.mxu0 0
        %1496 = vmatpush.bf16.msra.mxu0 0
        %1497 = vmatpush.bf16.msra.mxu0 0
        %1498 = vmatpush.bf16.msra.mxu0 %v1489
        %1499 = vmatmul.bf16.gmra.mxu0 %v1486
        %v1500 = vpop.f32.mrf.mxu0
        %v1501 = vadd.f32 0.0, %v1500
        %v1502 = vpop.f32.mrf.mxu0
        %1503 = vdwg.mxu0
        %1504 = vrot.lane.b32.xlu0 %v1441, 112
        %v1505 = vpop.permute.xlu0 %1504
        %1506 = vrot.lane.b32.xlu0 %v1446, 112
        %v1507 = vpop.permute.xlu0 %1506
        %v1509 = vsel %vm1387, %v1505, 0
        %v1512 = vsel %vm1387, %v1507, 0
        %1514 = vmatpush.bf16.xpose.msra.mxu0 0
        %1515 = vmatpush.bf16.xpose.msra.mxu0 0
        %1516 = vmatpush.bf16.xpose.msra.mxu0 0
        %1517 = vmatpush.bf16.xpose.msra.mxu0 0
        %1518 = vmatpush.bf16.xpose.msra.mxu0 0
        %1519 = vmatpush.bf16.xpose.msra.mxu0 0
        %1520 = vmatpush.bf16.xpose.msra.mxu0 0
        %1521 = vmatpush.bf16.xpose.msra.mxu0 %v1512
        %1522 = vmatmul.bf16.gmra.mxu0 %v1509
        %v1523 = vpop.f32.mrf.mxu0
        %v1524 = vadd.f32 %v1221, %v1523
        %v1525 = vpop.f32.mrf.mxu0
        %1526 = vdwg.mxu0
        %v1527 = vsel %vm1387, %v1524, -inf
        %1528 = vmax.xlane.f32.xlu0 %v1527
        %v1529 = vpop.xlane.xlu0 %1528
        %v1530 = vsub.f32 %v1524, %v1529
        %v1531 = vmul.f32 %v1530, 1.442695
        %v1532 = vpow.pop %v1531
        %v1533 = vsel %vm1387, %v1532, 0.0
        %1534 = vadd.xlane.f32.xlu0 %v1533
        %v1535 = vpop.xlane.xlu0 %1534
        %v1536 = vrcp.pop %v1535
        %v1537 = vmul.f32 %v1532, %v1536
        %v1538 = vpack.c.bf16 %v1537, %v1537
        %1539 = vrot.lane.b32.xlu0 %v1482, 112
        %v1540 = vpop.permute.xlu0 %1539
        %v1542 = vsel %vm1387, %v1538, 0
        %v1545 = vsel %vm1422, %v1540, 0
        %1547 = vmatpush.bf16.msra.mxu0 0
        %1548 = vmatpush.bf16.msra.mxu0 0
        %1549 = vmatpush.bf16.msra.mxu0 0
        %1550 = vmatpush.bf16.msra.mxu0 0
        %1551 = vmatpush.bf16.msra.mxu0 0
        %1552 = vmatpush.bf16.msra.mxu0 0
        %1553 = vmatpush.bf16.msra.mxu0 0
        %1554 = vmatpush.bf16.msra.mxu0 %v1545
        %1555 = vmatmul.bf16.gmra.mxu0 %v1542
        %v1556 = vpop.f32.mrf.mxu0
        %v1557 = vadd.f32 0.0, %v1556
        %v1558 = vpop.f32.mrf.mxu0
        %1559 = vdwg.mxu0
        %1560 = vrot.lane.b32.xlu0 %v1441, 104
        %v1561 = vpop.permute.xlu0 %1560
        %1562 = vrot.lane.b32.xlu0 %v1446, 104
        %v1563 = vpop.permute.xlu0 %1562
        %v1565 = vsel %vm1387, %v1561, 0
        %v1568 = vsel %vm1387, %v1563, 0
        %1570 = vmatpush.bf16.xpose.msra.mxu0 0
        %1571 = vmatpush.bf16.xpose.msra.mxu0 0
        %1572 = vmatpush.bf16.xpose.msra.mxu0 0
        %1573 = vmatpush.bf16.xpose.msra.mxu0 0
        %1574 = vmatpush.bf16.xpose.msra.mxu0 0
        %1575 = vmatpush.bf16.xpose.msra.mxu0 0
        %1576 = vmatpush.bf16.xpose.msra.mxu0 0
        %1577 = vmatpush.bf16.xpose.msra.mxu0 %v1568
        %1578 = vmatmul.bf16.gmra.mxu0 %v1565
        %v1579 = vpop.f32.mrf.mxu0
        %v1580 = vadd.f32 %v1221, %v1579
        %v1581 = vpop.f32.mrf.mxu0
        %1582 = vdwg.mxu0
        %v1583 = vsel %vm1387, %v1580, -inf
        %1584 = vmax.xlane.f32.xlu0 %v1583
        %v1585 = vpop.xlane.xlu0 %1584
        %v1586 = vsub.f32 %v1580, %v1585
        %v1587 = vmul.f32 %v1586, 1.442695
        %v1588 = vpow.pop %v1587
        %v1589 = vsel %vm1387, %v1588, 0.0
        %1590 = vadd.xlane.f32.xlu0 %v1589
        %v1591 = vpop.xlane.xlu0 %1590
        %v1592 = vrcp.pop %v1591
        %v1593 = vmul.f32 %v1588, %v1592
        %v1594 = vpack.c.bf16 %v1593, %v1593
        %1595 = vrot.lane.b32.xlu0 %v1482, 104
        %v1596 = vpop.permute.xlu0 %1595
        %v1598 = vsel %vm1387, %v1594, 0
        %v1601 = vsel %vm1422, %v1596, 0
        %1603 = vmatpush.bf16.msra.mxu0 0
        %1604 = vmatpush.bf16.msra.mxu0 0
        %1605 = vmatpush.bf16.msra.mxu0 0
        %1606 = vmatpush.bf16.msra.mxu0 0
        %1607 = vmatpush.bf16.msra.mxu0 0
        %1608 = vmatpush.bf16.msra.mxu0 0
        %1609 = vmatpush.bf16.msra.mxu0 0
        %1610 = vmatpush.bf16.msra.mxu0 %v1601
        %1611 = vmatmul.bf16.gmra.mxu0 %v1598
        %v1612 = vpop.f32.mrf.mxu0
        %v1613 = vadd.f32 0.0, %v1612
        %v1614 = vpop.f32.mrf.mxu0
        %1615 = vdwg.mxu0
        %1617 = vrot.lane.b32.xlu0 %v1501, 8
        %v1618 = vpop.permute.xlu0 %1617
        %1621 = vrot.lane.b32.xlu0 %v1557, 16
        %v1622 = vpop.permute.xlu0 %1621
        %1625 = vrot.lane.b32.xlu0 %v1613, 24
        %v1626 = vpop.permute.xlu0 %1625
        %v1628 = vsel %vm1387, %v1436, %v1618
        %v1629 = vsel %vm1339, %v1628, %v1622
        %vm1630 = vcmask 195584
        %v1631 = vsel %vm1630, %v1629, %v1626
        %v1632 = vpack.c.bf16 %v1631, %v1631
        %v1633 = vld [vmem:[%s1150] sm:$0xf]
        %v1634 = vld [vmem:[%s1150 + $0x4] sm:$0xf]
        %v1635 = vld [vmem:[%s1150 + $0x8] sm:$0xf]
        %v1636 = vld [vmem:[%s1150 + $0xc] sm:$0xf]
        %v1637 = vld [vmem:[%s1153] sm:$0x1]
        %v1639 = vperm.slane %v1637, 0
        %v1645 = vunpack.c.l.b16 %v1633
        %v1646 = vunpack.c.l.b16 %v1634
        %v1647 = vunpack.c.l.b16 %v1635
        %v1648 = vunpack.c.l.b16 %v1636
        %v1649 = vpack.c.b16 %v1646, %v1645
        %v1650 = vpack.c.b16 %v1648, %v1647
        %v1654 = vsel %vm1242, %v1632, 0
        %1656 = vmatpush.bf16.msra.mxu0 0
        %1657 = vmatpush.bf16.msra.mxu0 0
        %1658 = vmatpush.bf16.msra.mxu0 0
        %1659 = vmatpush.bf16.msra.mxu0 0
        %1660 = vmatpush.bf16.msra.mxu0 0
        %1661 = vmatpush.bf16.msra.mxu0 0
        %1662 = vmatpush.bf16.msra.mxu0 %v1650
        %1663 = vmatpush.bf16.msra.mxu0 %v1649
        %1664 = vmatmul.bf16.gmra.mxu0 %v1654
        %v1665 = vpop.f32.mrf.mxu0
        %v1666 = vadd.f32 %v1639, %v1665
        %v1667 = vpop.f32.mrf.mxu0
        %1668 = vdwg.mxu0
        %v1669 = vadd.f32 %v1219, %v1666
        %v1670 = vld [vmem:[%s1172] sm:$0x1]
        %v1671 = vld [vmem:[%s1175] sm:$0x1]
        %v1672 = vsel %vm1242, %v1669, 0.0
        %1673 = vadd.xlane.f32.xlu0 %v1672
        %v1674 = vpop.xlane.xlu0 %1673
        %v1675 = vrcp.pop 32.0
        %v1676 = vmul.f32 32.0, %v1675
        %v1677 = vsub.f32 1.0, %v1676
        %v1678 = vmul.f32 %v1675, %v1677
        %v1679 = vadd.f32 %v1675, %v1678
        %vm1680 = vweird.f32 %v1675
        %v1681 = vsel %vm1680, %v1675, %v1679
        %v1682 = vmul.f32 %v1674, %v1681
        %v1683 = vsub.f32 %v1669, %v1682
        %v1684 = vmul.f32 %v1683, %v1683
        %v1685 = vsel %vm1242, %v1684, 0.0
        %1686 = vadd.xlane.f32.xlu0 %v1685
        %v1687 = vpop.xlane.xlu0 %1686
        %v1688 = vmul.f32 %v1687, %v1681
        %v1689 = vadd.f32 %v1688, 1e-05
        %v1690 = vrsqrt.pop %v1689
        %v1691 = vmul.f32 %v1690, %v1689
        %v1692 = vmul.f32 %v1691, %v1690
        %v1693 = vmul.f32 0.5, %v1692
        %v1694 = vsub.f32 1.5, %v1693
        %v1695 = vmul.f32 %v1690, %v1694
        %vm1696 = vweird.f32 %v1689
        %vm1697 = vweird.f32 %v1690
        %vm1698 = vmor %vm1696, %vm1697
        %v1699 = vsel %vm1698, %v1690, %v1695
        %v1700 = vmul.f32 %v1683, %v1699
        %v1702 = vperm.slane %v1670, 0
        %v1704 = vmul.f32 %v1700, %v1702
        %v1706 = vperm.slane %v1671, 0
        %v1708 = vadd.f32 %v1704, %v1706
        %v1709 = vpack.c.bf16 %v1708, %v1708
        %v1710 = vld [vmem:[%s1158] sm:$0xf]
        %v1711 = vld [vmem:[%s1158 + $0x4] sm:$0xf]
        %v1712 = vld [vmem:[%s1158 + $0x8] sm:$0xf]
        %v1713 = vld [vmem:[%s1158 + $0xc] sm:$0xf]
        %v1714 = vld [vmem:[%s1161] sm:$0x1]
        %v1716 = vperm.slane %v1714, 0
        %v1722 = vunpack.c.l.b16 %v1710
        %v1723 = vunpack.c.l.b16 %v1711
        %v1724 = vunpack.c.l.b16 %v1712
        %v1725 = vunpack.c.l.b16 %v1713
        %v1726 = vpack.c.b16 %v1723, %v1722
        %v1727 = vpack.c.b16 %v1725, %v1724
        %v1731 = vsel %vm1242, %v1709, 0
        %1733 = vmatpush.bf16.msra.mxu0 0
        %1734 = vmatpush.bf16.msra.mxu0 0
        %1735 = vmatpush.bf16.msra.mxu0 0
        %1736 = vmatpush.bf16.msra.mxu0 0
        %1737 = vmatpush.bf16.msra.mxu0 0
        %1738 = vmatpush.bf16.msra.mxu0 0
        %1739 = vmatpush.bf16.msra.mxu0 %v1727
        %1740 = vmatpush.bf16.msra.mxu0 %v1726
        %1741 = vmatmul.bf16.gmra.mxu0 %v1731
        %v1742 = vpop.f32.mrf.mxu0
        %v1743 = vadd.f32 %v1716, %v1742
        %v1744 = vpop.f32.mrf.mxu0
        %1745 = vdwg.mxu0
        %v1746 = vmul.f32 %v1743, 0.5
        %v1747 = vmul.f32 %v1743, 0.044715
        %v1748 = vmul.f32 %v1747, %v1743
        %v1749 = vmul.f32 %v1748, %v1743
        %v1750 = vadd.f32 %v1743, %v1749
        %v1751 = vmul.f32 %v1750, 0.7978846
        %v1752 = vtanh.pop %v1751
        %v1753 = vadd.f32 %v1752, 1.0
        %v1754 = vmul.f32 %v1746, %v1753
        %v1755 = vpack.c.bf16 %v1754, %v1754
        %v1756 = vld [vmem:[%s1166] sm:$0xf]
        %v1757 = vld [vmem:[%s1166 + $0x4] sm:$0xf]
        %v1758 = vld [vmem:[%s1166 + $0x8] sm:$0xf]
        %v1759 = vld [vmem:[%s1166 + $0xc] sm:$0xf]
        %v1760 = vld [vmem:[%s1166 + $0x10] sm:$0xf]
        %v1761 = vld [vmem:[%s1166 + $0x14] sm:$0xf]
        %v1762 = vld [vmem:[%s1166 + $0x18] sm:$0xf]
        %v1763 = vld [vmem:[%s1166 + $0x1c] sm:$0xf]
        %v1764 = vld [vmem:[%s1169] sm:$0x1]
        %v1766 = vperm.slane %v1764, 0
        %v1776 = vunpack.c.l.b16 %v1756
        %v1777 = vunpack.c.l.b16 %v1757
        %v1778 = vunpack.c.l.b16 %v1758
        %v1779 = vunpack.c.l.b16 %v1759
        %v1780 = vunpack.c.l.b16 %v1760
        %v1781 = vunpack.c.l.b16 %v1761
        %v1782 = vunpack.c.l.b16 %v1762
        %v1783 = vunpack.c.l.b16 %v1763
        %v1784 = vpack.c.b16 %v1777, %v1776
        %v1785 = vpack.c.b16 %v1779, %v1778
        %v1786 = vpack.c.b16 %v1781, %v1780
        %v1787 = vpack.c.b16 %v1783, %v1782
        %vm1792 = vcmask 523264
        %v1794 = vsel %vm1792, %v1755, 0
        %1796 = vmatpush.bf16.msra.mxu0 0
        %1797 = vmatpush.bf16.msra.mxu0 0
        %1798 = vmatpush.bf16.msra.mxu0 0
        %1799 = vmatpush.bf16.msra.mxu0 0
        %1800 = vmatpush.bf16.msra.mxu0 %v1787
        %1801 = vmatpush.bf16.msra.mxu0 %v1786
        %1802 = vmatpush.bf16.msra.mxu0 %v1785
        %1803 = vmatpush.bf16.msra.mxu0 %v1784
        %1804 = vmatmul.bf16.gmra.mxu0 %v1794
        %v1805 = vpop.f32.mrf.mxu0
        %v1806 = vadd.f32 %v1766, %v1805
        %v1807 = vpop.f32.mrf.mxu0
        %1808 = vdwg.mxu0
        %v1809 = vadd.f32 %v1708, %v1806
        %v1810 = vld [vmem:[%s958] sm:$0x1]
        %v1811 = vld [vmem:[%s1178] sm:$0x1]
        %v1812 = vsel %vm1242, %v1809, 0.0
        %1813 = vadd.xlane.f32.xlu0 %v1812
        %v1814 = vpop.xlane.xlu0 %1813
        %v1815 = vmul.f32 %v1814, %v1681
        %v1816 = vsub.f32 %v1809, %v1815
        %v1817 = vmul.f32 %v1816, %v1816
        %v1818 = vsel %vm1242, %v1817, 0.0
        %1819 = vadd.xlane.f32.xlu0 %v1818
        %v1820 = vpop.xlane.xlu0 %1819
        %v1821 = vmul.f32 %v1820, %v1681
        %v1822 = vadd.f32 %v1821, 1e-05
        %v1823 = vrsqrt.pop %v1822
        %v1824 = vmul.f32 %v1823, %v1822
        %v1825 = vmul.f32 %v1824, %v1823
        %v1826 = vmul.f32 0.5, %v1825
        %v1827 = vsub.f32 1.5, %v1826
        %v1828 = vmul.f32 %v1823, %v1827
        %vm1829 = vweird.f32 %v1822
        %vm1830 = vweird.f32 %v1823
        %vm1831 = vmor %vm1829, %vm1830
        %v1832 = vsel %vm1831, %v1823, %v1828
        %v1833 = vmul.f32 %v1816, %v1832
        %v1835 = vperm.slane %v1810, 0
        %v1837 = vmul.f32 %v1833, %v1835
        %v1839 = vperm.slane %v1811, 0
        %v1841 = vadd.f32 %v1837, %v1839
        %1842 = vst.msk [vmem:[#allocation2] sm:$0xff] %vm1242, %v1841
        %p1843 = scmp.eq.s32.totalorder %s47, 1
        // Predicated region
        $region145: #{tpu_custom_call.1} parent=119 // pred_check
          %p1844 = pneg %p1843
        $region146: #{tpu_custom_call.1} parent=119 // pred_check_branch
          %1846 = sbr.rel (%p1844) target = $region148
        $region147: #{tpu_custom_call.1} parent=119 // pred_region
          %1847 = vst.msk [vmem:[%s1101] sm:$0xff] %vm1242, %v1841
        $region148: #{tpu_custom_call.1} parent=119 // pred_fallthru
          _
        %s1848 = sand.u32 %s692, 1
        %s1849 = scalar_lea.sflag [#allocation5], %s1848
        %s1850 = sand.u32 %s692, 1
        %s1851 = smul.addr %s1850, 8
        %s1852 = scalar_lea.vmem [#allocation12], %s1851
        // Predicated region
        $region149: #{tpu_custom_call.1} parent=119 // pred_check
          %p1853 = pneg %p702
        $region150: #{tpu_custom_call.1} parent=119 // pred_check_branch
          %1855 = sbr.rel (%p1853) target = $region152
        $region151: #{tpu_custom_call.1} parent=119 // pred_region
          %1857 = vsyncadd %s1849, 0
          %s1858 = smul.addr %s46, 8
          %s1859 = scalar_lea.hbm %s25, %s1858
          %s1861 = sshll.u32 %s1852, 4
          %s1862 = int_to_ptr.vmem [resolvable:$true] %s1861
          %s1863 = sshll.u32 %s1859, 4
          %s1864 = int_to_ptr.hbm [resolvable:$true] %s1863
          %1866 = dma.vmem_to_hbm [thread:$0]  %s1862, 128, %s1864, %s1849
        $region152: #{tpu_custom_call.1} parent=119 // pred_fallthru
          _
      $region120: #{tpu_custom_call.1} parent=5 // pred_fallthru
        _
      %p1867 = scmp.le.s32.totalorder 2, %s37
      // Predicated region
      $region153: #{tpu_custom_call.1} parent=5 // pred_check
        %p1868 = pneg %p1867
      $region154: #{tpu_custom_call.1} parent=5 // pred_check_branch
        %1870 = sbr.rel (%p1868) target = $region156
      $region155: #{tpu_custom_call.1} parent=5 // pred_region
        %s1871 = ssub.s32 %s37, 2
        // Predicated region
        $region157: #{tpu_custom_call.1} parent=155 // pred_check
          %p1872 = pneg %p708
        $region158: #{tpu_custom_call.1} parent=155 // pred_check_branch
          %1874 = sbr.rel (%p1872) target = $region160
        $region159: #{tpu_custom_call.1} parent=155 // pred_region
          %s1875 = sand.u32 %s693, 1
          %s1876 = scalar_lea.sflag [#allocation5], %s1875
          %s1877 = sand.u32 %s693, 1
          %s1878 = smul.addr %s1877, 8
          %s1879 = scalar_lea.vmem [#allocation12], %s1878
          %1881 = dma.done %s1876, 128
        $region160: #{tpu_custom_call.1} parent=155 // pred_fallthru
          _
      $region156: #{tpu_custom_call.1} parent=5 // pred_fallthru
        _
    $region6: #{tpu_custom_call.1} parent=1 // loop_footer
      %s41 = sadd.s32 1, %s37
    $region7: #{tpu_custom_call.1} parent=1 // loop_footer_branch
      %36 = sbr.rel target = $region3
    $region8: #{tpu_custom_call.1} parent=1 // loop_exit
      _
    %1882 = vsyncpa [#allocation4], 1
    %s1883 = scalar_lea.sflag [#allocation4], 1
    %1884 = vsyncpa %s1883, 1
    %1885 = vsyncpa [#allocation7], 1
    %1886 = vsyncpa [#allocation10], 1
    %1887 = vsyncpa [#allocation5], 1
    %s1888 = scalar_lea.sflag [#allocation5], 1
    %1889 = vsyncpa %s1888, 1

</llo_original>
